<compile_context>
chip_gen: v7x
topology: tpu7x:2x2x1
jax: 0.10.0
libtpu: 0.0.40
codegen_flags: <defaults>
</compile_context>

<pallas_src>
import math

import jax
import jax.numpy as jnp
from jax.experimental import pallas as pl
from jax.experimental.pallas import tpu as pltpu


def _round_up(x, m):
    return ((x + m - 1) // m) * m


def _cdiv(a, b):
    return -(-a // b)


def _bf16_vpu_available():
    """v6e / v7x have bf16 VALUs; v5e does not (keep the f32 epilogue there)."""
    try:
        kind = jax.devices()[0].device_kind.lower()
    except Exception:
        return False
    return ("v6" in kind) or ("v7" in kind) or ("7x" in kind)


# ----------------------------------------------------------------------------
# Fused Pallas kernel: all MSG scales' (conv1x1+BN+ReLU)^L chains + max over K
# ----------------------------------------------------------------------------
def make_fused_mlp_max_kernel(scale_meta, ks, bf16_epilogue):
    """scale_meta[s] = tuple of (row_off, cin, cout, bias_row) per layer in the packed
    weight/bias buffers; the LAST layer of each scale has cout == c_pad (zero-padded to
    the shared lane width at a per-scale column offset).  ks[s] = that scale's K."""
    n_scales = len(scale_meta)

    def kernel(*refs):
        feat_refs = refs[:n_scales]
        w_ref = refs[n_scales]          # [R, c_pad]   bf16  packed folded conv+BN weights
        b_ref = refs[n_scales + 1]      # [L_pad, c_pad] f32 packed folded biases
        out_ref = refs[-1]              # [TS, c_pad]  f32

        acc = jnp.zeros(out_ref.shape, jnp.float32)
        for s in range(n_scales):
            k = ks[s]
            layers = scale_meta[s]
            n_layers = len(layers)
            h = feat_refs[s][...]                               # [TS*k, C0_pad] bf16
            z = None
            for li, (row_off, cin, cout, brow) in enumerate(layers):
                w_l = w_ref[row_off:row_off + cin, :cout]       # bf16, VMEM-resident slice
                z = jnp.dot(h, w_l, preferred_element_type=jnp.float32)   # MXU, f32 acc
                b_l = b_ref[brow:brow + 1, :cout]               # [1, cout] f32
                if li == n_layers - 1:
                    z = jnp.maximum(z + b_l, 0.0)               # last epilogue stays f32
                elif bf16_epilogue:
                    # v6e/v7x: bf16 VALU halves the VPU epilogue (MXU acc kept in f32).
                    h = jnp.maximum(z.astype(jnp.bfloat16) + b_l.astype(jnp.bfloat16), 0.0)
                else:
                    # v5e: no bf16 VPU -> f32 add/relu, single cast for the next matmul.
                    h = jnp.maximum(z + b_l, 0.0).astype(jnp.bfloat16)
            ts = z.shape[0] // k
            # Max-pool over the K neighbour axis.  z is f32 and k is a multiple of 8, so
            # the reshape is layout-preserving and the reduction is an XLU sublane max.
            # Scales occupy disjoint zero-padded columns -> a plain add fuses them.
            acc = acc + jnp.max(z.reshape(ts, k, z.shape[-1]), axis=1)
        out_ref[...] = acc                                      # single full-width store

    return kernel


def fused_mlp_max_pallas(feats2d, ks, w_packed, b_packed, scale_meta, c_pad, tile_s,
                         bf16_epilogue):
    """feats2d[s]: [S_pad*K_s, C0_pad] bf16.  Returns [S_pad, c_pad] f32 with each
    scale's output at its packed column offset."""
    s_pad = feats2d[0].shape[0] // ks[0]
    assert s_pad % tile_s == 0
    n_tiles = s_pad // tile_s

    in_specs = []
    for f, k in zip(feats2d, ks):
        in_specs.append(pl.BlockSpec((tile_s * k, f.shape[1]), lambda i: (i, 0)))
    # Two packed parameter buffers with constant index maps -> stay VMEM-resident.
    in_specs.append(pl.BlockSpec(w_packed.shape, lambda i: (0, 0)))
    in_specs.append(pl.BlockSpec(b_packed.shape, lambda i: (0, 0)))

    return pl.pallas_call(
        make_fused_mlp_max_kernel(scale_meta, ks, bf16_epilogue),
        grid=(n_tiles,),
        in_specs=in_specs,
        out_specs=pl.BlockSpec((tile_s, c_pad), lambda i: (i, 0)),
        out_shape=jax.ShapeDtypeStruct((s_pad, c_pad), jnp.float32),
        compiler_params=pltpu.CompilerParams(
            # S tiles are independent -> shard the grid across v7x's 2 TensorCores.
            dimension_semantics=("parallel",),
            # Well above actual need at these tile sizes and within every generation's
            # budget (v7x physical VMEM is 64 MiB); not a reason to keep tiles small.
            vmem_limit_bytes=32 * 1024 * 1024,
        ),
    )(*feats2d, w_packed, b_packed)


# ----------------------------------------------------------------------------
# Plain-JAX glue: farthest point sampling and (piece-restricted) kNN grouping
# ----------------------------------------------------------------------------
def fps_single(xyz, n_samples, start_idx=0):
    """xyz: [Np, 3] float32 -> [n_samples] int32 indices.
    # TODO(synk): torch_cluster.fps uses a random start point; deterministic here."""
    npts = xyz.shape[0]

    def body(i, state):
        sel, dist, farthest = state
        sel = sel.at[i].set(farthest)
        centroid = xyz[farthest]
        d = jnp.sum((xyz - centroid) ** 2, axis=-1)
        dist = jnp.minimum(dist, d)
        farthest = jnp.argmax(dist).astype(jnp.int32)
        return sel, dist, farthest

    sel0 = jnp.zeros((n_samples,), jnp.int32)
    dist0 = jnp.full((npts,), jnp.inf, jnp.float32)
    sel, _, _ = jax.lax.fori_loop(0, n_samples, body,
                                  (sel0, dist0, jnp.int32(start_idx)))
    return sel


def knn_grouped(xyz, piece, new_xyz, new_piece, k):
    """kNN restricted to the same piece. xyz:[N,3], piece:[N], new_xyz:[S,3] -> idx [S,k].
    Invalid slots (piece smaller than k) are filled with the nearest neighbour, matching
    the PyTorch fill-with-first behaviour.
    # TODO(synk): at production N/S this dense [S,N] distance + top_k (and fps_single's
    # sequential argmax loop) dominate wall-clock before the fused kernel does; a tiled
    # top-k would be the next thing to kernelize."""
    d2 = jnp.sum((new_xyz[:, None, :] - xyz[None, :, :]) ** 2, axis=-1)   # [S, N]
    same = new_piece[:, None] == piece[None, :]
    d2 = jnp.where(same, d2, jnp.inf)
    neg_d, idx = jax.lax.top_k(-d2, k)
    valid = neg_d > -jnp.inf
    idx = jnp.where(valid, idx, idx[:, :1])
    return idx


# ----------------------------------------------------------------------------
# Parameter construction (deterministic, synthetic) with BN folded into conv
# ----------------------------------------------------------------------------
def build_params(key, in_channel, mlp_list, eps=1e-5):
    params = []
    for mlp in mlp_list:
        ws, bs = [], []
        last = in_channel + 3
        for out_c in mlp:
            key, k1, k2, k3, k4, k5, k6 = jax.random.split(key, 7)
            w = 0.1 * jax.random.normal(k1, (out_c, last), jnp.float32)   # conv weight [Cout,Cin]
            b = 0.05 * jax.random.normal(k2, (out_c,), jnp.float32)       # conv bias
            gamma = 1.0 + 0.1 * jax.random.normal(k3, (out_c,), jnp.float32)
            beta = 0.05 * jax.random.normal(k4, (out_c,), jnp.float32)
            mean = 0.05 * jax.random.normal(k5, (out_c,), jnp.float32)
            var = 0.5 + jnp.abs(jax.random.normal(k6, (out_c,), jnp.float32))
            scale = gamma / jnp.sqrt(var + eps)
            w_f = (w * scale[:, None]).T                 # folded, transposed -> [Cin, Cout]
            b_f = ((b - mean) * scale + beta)[None, :]   # [1, Cout]
            ws.append(w_f)
            bs.append(b_f)
            last = out_c
        params.append((ws, bs))
    return params


def prepare_kernel_params(params, c_pad):
    """Pack ALL layers' folded weights into one bf16 [R, c_pad] buffer (each layer's row
    block 16-aligned so in-kernel static slices never straddle a bf16 sublane group) and
    all biases into one f32 [L_pad, c_pad] buffer.  Each scale's LAST layer is zero-padded
    to the full c_pad lane width at a per-scale column offset so the scale outputs fuse
    into a single lane-dense block."""
    w_blocks, b_rows = [], []
    scale_meta = []
    col_off = 0
    row_off = 0
    brow = 0
    for ws, bs in params:
        n_layers = len(ws)
        meta = []
        this_off = col_off
        for li, (w, b) in enumerate(zip(ws, bs)):
            cin, cout = w.shape
            cin_use = _round_up(cin, 16) if li == 0 else cin   # feature C0 is padded to 16
            cin_blk = _round_up(cin_use, 16)
            is_last = li == n_layers - 1
            w_blk = jnp.zeros((cin_blk, c_pad), jnp.float32)
            b_row = jnp.zeros((1, c_pad), jnp.float32)
            if is_last:
                w_blk = w_blk.at[:cin, this_off:this_off + cout].set(w)
                b_row = b_row.at[:, this_off:this_off + cout].set(b)
                meta.append((row_off, cin_use, c_pad, brow))
            else:
                w_blk = w_blk.at[:cin, :cout].set(w)
                b_row = b_row.at[:, :cout].set(b)
                meta.append((row_off, cin_use, cout, brow))
            w_blocks.append(w_blk)
            b_rows.append(b_row)
            row_off += cin_blk
            brow += 1
        col_off += ws[-1].shape[1]
        scale_meta.append(tuple(meta))
    w_packed = jnp.concatenate(w_blocks, axis=0).astype(jnp.bfloat16)
    b_packed = jnp.concatenate(b_rows, axis=0)
    l_pad = _round_up(b_packed.shape[0], 8)
    if l_pad != b_packed.shape[0]:
        b_packed = jnp.pad(b_packed, ((0, l_pad - b_packed.shape[0]), (0, 0)))
    return w_packed, b_packed, tuple(scale_meta), col_off   # col_off == total channels


def _choose_tile_s(S, tile_s):
    """tile_s multiple of 16 (so M = TS*K feeds the MXU well), non-trivial per-step work,
    and at least two grid tiles when S permits so v7x's second TensorCore gets work."""
    t = _round_up(max(16, min(int(tile_s), max(S, 16))), 16)
    if _cdiv(S, t) < 2 and S > 16:
        t = _round_up(_cdiv(S, 2), 16)
    return t


# ----------------------------------------------------------------------------
# Forward pass
# ----------------------------------------------------------------------------
def set_abstraction_msg_dynamic(xyz, piece_id, points, params, ratio, nsample_list,
                                piece_sizes, tile_s=128):
    """
    xyz:      [1, 3, N]  float32
    piece_id: [1, 1, N]  int32
    points:   [1, D, N]  float32 (or None)
    returns (new_xyz [1,3,S], new_piece_id [1,1,S], new_points_concat [1, D', S])
    """
    xyz_b = jnp.transpose(xyz, (0, 2, 1))[0]                 # [N, 3]
    piece_b = jnp.transpose(piece_id, (0, 2, 1))[0, :, 0]    # [N]
    pts_b = jnp.transpose(points, (0, 2, 1))[0] if points is not None else None  # [N, D]

    # FPS per piece.  TODO(synk): torch_cluster.fps uses a random start and a runtime
    # per-piece batch; JAX needs static shapes, so the piece partition is static here.
    centroids = []
    offset = 0
    for size in piece_sizes:
        n_s = int(math.ceil(ratio * size))
        local = fps_single(xyz_b[offset:offset + size], n_s)
        centroids.append(local + offset)
        offset += size
    centroids = jnp.concatenate(centroids)                   # [S]

    new_xyz = xyz_b[centroids]                               # [S, 3]
    new_piece = piece_b[centroids]                           # [S]
    S = new_xyz.shape[0]

    # ---- build fused-kernel inputs ------------------------------------------------
    c0 = params[0][0][0].shape[0]                            # in_channel + 3
    c0_pad = _round_up(c0, 16)
    c_lasts = [ws[-1].shape[1] for ws, _ in params]
    c_pad = _round_up(sum(c_lasts), 128)                     # lane-dense output width
    w_packed, b_packed, scale_meta, c_total = prepare_kernel_params(params, c_pad)

    tile_s_eff = _choose_tile_s(S, tile_s)
    s_pad = _round_up(S, tile_s_eff)

    ks = tuple(int(k) for k in nsample_list)                 # per-scale K (no k_max pad)
    feats2d = []
    for k in ks:
        # TODO(synk): at production N/S this XLA gather round-trips the grouped features
        # through HBM; fusing it into the kernel (scalar-prefetched group_idx + gather
        # from a VMEM-resident point table) would remove that traffic.
        group_idx = knn_grouped(xyz_b, piece_b, new_xyz, new_piece, k)   # [S, k]
        grouped_xyz = xyz_b[group_idx] - new_xyz[:, None, :]             # [S, k, 3]
        if pts_b is not None:
            feat = jnp.concatenate([pts_b[group_idx], grouped_xyz], axis=-1)
        else:
            feat = grouped_xyz                                           # [S, k, C0]
        feat = jnp.pad(feat, ((0, s_pad - S), (0, 0), (0, c0_pad - c0)))
        # Pre-flatten to 2-D so the kernel's matmul input needs no bf16 relayout.
        feats2d.append(feat.reshape(s_pad * k, c0_pad).astype(jnp.bfloat16))

    out = fused_mlp_max_pallas(feats2d, ks, w_packed, b_packed, scale_meta, c_pad,
                               tile_s_eff, _bf16_vpu_available())         # [S_pad, c_pad]

    new_xyz_out = new_xyz.T[None]                            # [1, 3, S]
    new_piece_out = new_piece[None, None, :]                 # [1, 1, S]
    new_points_concat = out[:S, :c_total].T[None]            # [1, D', S]
    return new_xyz_out, new_piece_out, new_points_concat


# ----------------------------------------------------------------------------
if __name__ == "__main__":
    # module config (typical PointNet++ MSG setting at small scale)
    ratio = 0.25
    radius_list = [0.1, 0.2]        # NOTE: unused by the forward (it uses knn), as in PyTorch
    nsample_list = [8, 16]
    in_channel = 4
    mlp_list = [[16, 16, 32], [32, 32, 64]]

    # inputs
    B, N, D = 1, 64, in_channel
    key = jax.random.PRNGKey(0)
    k_xyz, k_pts, k_par = jax.random.split(key, 3)
    xyz = jax.random.normal(k_xyz, (B, 3, N), jnp.float32)
    points = jax.random.normal(k_pts, (B, D, N), jnp.float32)
    piece_sizes = (32, 32)          # two pieces, known statically in this synthetic script
    piece_id = jnp.concatenate(
        [jnp.full((1, 1, s), i, jnp.int32) for i, s in enumerate(piece_sizes)], axis=-1
    )

    params = build_params(k_par, in_channel, mlp_list)

    new_xyz, new_piece_id, new_points = set_abstraction_msg_dynamic(
        xyz, piece_id, points, params, ratio, nsample_list, piece_sizes
    )
    jax.block_until_ready((new_xyz, new_piece_id, new_points))

    S_expected = sum(int(math.ceil(ratio * s)) for s in piece_sizes)
    Dp_expected = sum(m[-1] for m in mlp_list)
    assert new_xyz.shape == (1, 3, S_expected), new_xyz.shape
    assert new_piece_id.shape == (1, 1, S_expected), new_piece_id.shape
    assert new_points.shape == (1, Dp_expected, S_expected), new_points.shape
    assert bool(jnp.all(jnp.isfinite(new_points)))

    print("KERNEL_OK")
</pallas_src>

<mosaic_0001>
module attributes {stable_mosaic.version = 11 : i64} {
  func.func @kernel(%arg0: i32, %arg1: memref<128x16xbf16, #tpu.memory_space<vmem>>, %arg2: memref<256x16xbf16, #tpu.memory_space<vmem>>, %arg3: memref<128x128xbf16, #tpu.memory_space<vmem>>, %arg4: memref<8x128xf32, #tpu.memory_space<vmem>>, %arg5: memref<16x128xf32, #tpu.memory_space<vmem>>) attributes {dimension_semantics = [#tpu.dimension_semantics<parallel>], iteration_bounds = array<i64: 1>, scalar_prefetch = 0 : i64, scratch_operands = 0 : i64, tpu.core_type = #tpu.core_type<tc>, window_params = [{transform_indices = @transform_0, window_bounds = array<i64: 128, 16>}, {transform_indices = @transform_1, window_bounds = array<i64: 256, 16>}, {pipeline_mode = #tpu.pipeline_mode<synchronous>, transform_indices = @transform_2, window_bounds = array<i64: 128, 128>}, {pipeline_mode = #tpu.pipeline_mode<synchronous>, transform_indices = @transform_3, window_bounds = array<i64: 8, 128>}, {transform_indices = @transform_4, window_bounds = array<i64: 16, 128>}]} {
    %cst = arith.constant 0.000000e+00 : f32
    %0 = vector.broadcast %cst : f32 to vector<16x128xf32>
    %c0 = arith.constant 0 : index
    %c0_0 = arith.constant 0 : index
    %1 = vector.load %arg1[%c0, %c0_0] : memref<128x16xbf16, #tpu.memory_space<vmem>>, vector<128x16xbf16>
    %c0_1 = arith.constant 0 : index
    %c0_2 = arith.constant 0 : index
    %2 = vector.load %arg3[%c0_1, %c0_2] : memref<128x128xbf16, #tpu.memory_space<vmem>>, vector<16x16xbf16>
    %cst_3 = arith.constant dense<0.000000e+00> : vector<128x16xf32>
    %3 = tpu.matmul %1, %2, %cst_3 {dimension_numbers = #tpu.dot_dimension_numbers<[1], [0], [0], [1], [0, 0, 1, 1], [], []>} : vector<128x16xbf16>, vector<16x16xbf16>, vector<128x16xf32> -> vector<128x16xf32>
    %c0_4 = arith.constant 0 : index
    %c0_5 = arith.constant 0 : index
    %4 = vector.load %arg4[%c0_4, %c0_5] : memref<8x128xf32, #tpu.memory_space<vmem>>, vector<1x16xf32>
    %5 = vector.broadcast %4 : vector<1x16xf32> to vector<128x16xf32>
    %6 = arith.addf %3, %5 : vector<128x16xf32>
    %cst_6 = arith.constant 0.000000e+00 : f32
    %7 = vector.broadcast %cst_6 : f32 to vector<128x16xf32>
    %8 = arith.maximumf %6, %7 : vector<128x16xf32>
    %9 = arith.truncf %8 : vector<128x16xf32> to vector<128x16xbf16>
    %c16 = arith.constant 16 : index
    %c0_7 = arith.constant 0 : index
    %10 = vector.load %arg3[%c16, %c0_7] : memref<128x128xbf16, #tpu.memory_space<vmem>>, vector<16x16xbf16>
    %cst_8 = arith.constant dense<0.000000e+00> : vector<128x16xf32>
    %11 = tpu.matmul %9, %10, %cst_8 {dimension_numbers = #tpu.dot_dimension_numbers<[1], [0], [0], [1], [0, 0, 1, 1], [], []>} : vector<128x16xbf16>, vector<16x16xbf16>, vector<128x16xf32> -> vector<128x16xf32>
    %c1 = arith.constant 1 : index
    %c0_9 = arith.constant 0 : index
    %12 = vector.load %arg4[%c1, %c0_9] : memref<8x128xf32, #tpu.memory_space<vmem>>, vector<1x16xf32>
    %13 = vector.broadcast %12 : vector<1x16xf32> to vector<128x16xf32>
    %14 = arith.addf %11, %13 : vector<128x16xf32>
    %cst_10 = arith.constant 0.000000e+00 : f32
    %15 = vector.broadcast %cst_10 : f32 to vector<128x16xf32>
    %16 = arith.maximumf %14, %15 : vector<128x16xf32>
    %17 = arith.truncf %16 : vector<128x16xf32> to vector<128x16xbf16>
    %c32 = arith.constant 32 : index
    %c0_11 = arith.constant 0 : index
    %18 = vector.load %arg3[%c32, %c0_11] : memref<128x128xbf16, #tpu.memory_space<vmem>>, vector<16x128xbf16>
    %cst_12 = arith.constant dense<0.000000e+00> : vector<128x128xf32>
    %19 = tpu.matmul %17, %18, %cst_12 {dimension_numbers = #tpu.dot_dimension_numbers<[1], [0], [0], [1], [0, 0, 1, 1], [], []>} : vector<128x16xbf16>, vector<16x128xbf16>, vector<128x128xf32> -> vector<128x128xf32>
    %c2 = arith.constant 2 : index
    %c0_13 = arith.constant 0 : index
    %20 = vector.load %arg4[%c2, %c0_13] : memref<8x128xf32, #tpu.memory_space<vmem>>, vector<1x128xf32>
    %21 = vector.broadcast %20 : vector<1x128xf32> to vector<128x128xf32>
    %22 = arith.addf %19, %21 : vector<128x128xf32>
    %cst_14 = arith.constant 0.000000e+00 : f32
    %23 = vector.broadcast %cst_14 : f32 to vector<128x128xf32>
    %24 = arith.maximumf %22, %23 : vector<128x128xf32>
    %25 = vector.shape_cast %24 : vector<128x128xf32> to vector<16x8x128xf32>
    %cst_15 = arith.constant dense<0xFF800000> : vector<16x128xf32>
    %26 = vector.multi_reduction <maximumf>, %25, %cst_15 [1] : vector<16x8x128xf32> to vector<16x128xf32>
    %27 = arith.addf %0, %26 : vector<16x128xf32>
    %c0_16 = arith.constant 0 : index
    %c0_17 = arith.constant 0 : index
    %28 = vector.load %arg2[%c0_16, %c0_17] : memref<256x16xbf16, #tpu.memory_space<vmem>>, vector<256x16xbf16>
    %c48 = arith.constant 48 : index
    %c0_18 = arith.constant 0 : index
    %29 = vector.load %arg3[%c48, %c0_18] : memref<128x128xbf16, #tpu.memory_space<vmem>>, vector<16x32xbf16>
    %cst_19 = arith.constant dense<0.000000e+00> : vector<256x32xf32>
    %30 = tpu.matmul %28, %29, %cst_19 {dimension_numbers = #tpu.dot_dimension_numbers<[1], [0], [0], [1], [0, 0, 1, 1], [], []>} : vector<256x16xbf16>, vector<16x32xbf16>, vector<256x32xf32> -> vector<256x32xf32>
    %c3 = arith.constant 3 : index
    %c0_20 = arith.constant 0 : index
    %31 = vector.load %arg4[%c3, %c0_20] : memref<8x128xf32, #tpu.memory_space<vmem>>, vector<1x32xf32>
    %32 = vector.broadcast %31 : vector<1x32xf32> to vector<256x32xf32>
    %33 = arith.addf %30, %32 : vector<256x32xf32>
    %cst_21 = arith.constant 0.000000e+00 : f32
    %34 = vector.broadcast %cst_21 : f32 to vector<256x32xf32>
    %35 = arith.maximumf %33, %34 : vector<256x32xf32>
    %36 = arith.truncf %35 : vector<256x32xf32> to vector<256x32xbf16>
    %c64 = arith.constant 64 : index
    %c0_22 = arith.constant 0 : index
    %37 = vector.load %arg3[%c64, %c0_22] : memref<128x128xbf16, #tpu.memory_space<vmem>>, vector<32x32xbf16>
    %cst_23 = arith.constant dense<0.000000e+00> : vector<256x32xf32>
    %38 = tpu.matmul %36, %37, %cst_23 {dimension_numbers = #tpu.dot_dimension_numbers<[1], [0], [0], [1], [0, 0, 1, 1], [], []>} : vector<256x32xbf16>, vector<32x32xbf16>, vector<256x32xf32> -> vector<256x32xf32>
    %c4 = arith.constant 4 : index
    %c0_24 = arith.constant 0 : index
    %39 = vector.load %arg4[%c4, %c0_24] : memref<8x128xf32, #tpu.memory_space<vmem>>, vector<1x32xf32>
    %40 = vector.broadcast %39 : vector<1x32xf32> to vector<256x32xf32>
    %41 = arith.addf %38, %40 : vector<256x32xf32>
    %cst_25 = arith.constant 0.000000e+00 : f32
    %42 = vector.broadcast %cst_25 : f32 to vector<256x32xf32>
    %43 = arith.maximumf %41, %42 : vector<256x32xf32>
    %44 = arith.truncf %43 : vector<256x32xf32> to vector<256x32xbf16>
    %c96 = arith.constant 96 : index
    %c0_26 = arith.constant 0 : index
    %45 = vector.load %arg3[%c96, %c0_26] : memref<128x128xbf16, #tpu.memory_space<vmem>>, vector<32x128xbf16>
    %cst_27 = arith.constant dense<0.000000e+00> : vector<256x128xf32>
    %46 = tpu.matmul %44, %45, %cst_27 {dimension_numbers = #tpu.dot_dimension_numbers<[1], [0], [0], [1], [0, 0, 1, 1], [], []>} : vector<256x32xbf16>, vector<32x128xbf16>, vector<256x128xf32> -> vector<256x128xf32>
    %c5 = arith.constant 5 : index
    %c0_28 = arith.constant 0 : index
    %47 = vector.load %arg4[%c5, %c0_28] : memref<8x128xf32, #tpu.memory_space<vmem>>, vector<1x128xf32>
    %48 = vector.broadcast %47 : vector<1x128xf32> to vector<256x128xf32>
    %49 = arith.addf %46, %48 : vector<256x128xf32>
    %cst_29 = arith.constant 0.000000e+00 : f32
    %50 = vector.broadcast %cst_29 : f32 to vector<256x128xf32>
    %51 = arith.maximumf %49, %50 : vector<256x128xf32>
    %52 = vector.shape_cast %51 : vector<256x128xf32> to vector<16x16x128xf32>
    %cst_30 = arith.constant dense<0xFF800000> : vector<16x128xf32>
    %53 = vector.multi_reduction <maximumf>, %52, %cst_30 [1] : vector<16x16x128xf32> to vector<16x128xf32>
    %54 = arith.addf %27, %53 : vector<16x128xf32>
    %c0_31 = arith.constant 0 : index
    %c0_32 = arith.constant 0 : index
    %55 = vector.load %arg5[%c0_31, %c0_32] : memref<16x128xf32, #tpu.memory_space<vmem>>, vector<16x128xf32>
    tpu.vector_store %arg5[%c0_31, %c0_32], %54 {strides = array<i32>} : memref<16x128xf32, #tpu.memory_space<vmem>>, vector<16x128xf32>,
    return
  }
  func.func @transform_0(%arg0: i32) -> (i32, i32) {
    %c0_i32 = arith.constant 0 : i32
    %c0_i32_0 = arith.constant 0 : i32
    return %arg0, %c0_i32 : i32, i32
  }
  func.func @transform_1(%arg0: i32) -> (i32, i32) {
    %c0_i32 = arith.constant 0 : i32
    %c0_i32_0 = arith.constant 0 : i32
    return %arg0, %c0_i32 : i32, i32
  }
  func.func @transform_2(%arg0: i32) -> (i32, i32) {
    %c0_i32 = arith.constant 0 : i32
    %c0_i32_0 = arith.constant 0 : i32
    %c0_i32_1 = arith.constant 0 : i32
    return %c0_i32, %c0_i32_0 : i32, i32
  }
  func.func @transform_3(%arg0: i32) -> (i32, i32) {
    %c0_i32 = arith.constant 0 : i32
    %c0_i32_0 = arith.constant 0 : i32
    %c0_i32_1 = arith.constant 0 : i32
    return %c0_i32, %c0_i32_0 : i32, i32
  }
  func.func @transform_4(%arg0: i32) -> (i32, i32) {
    %c0_i32 = arith.constant 0 : i32
    %c0_i32_0 = arith.constant 0 : i32
    return %arg0, %c0_i32 : i32, i32
  }
}

</mosaic_0001>

<llo_original>
// kernel: tpu_custom_call.1
$region0: #{tpu_custom_call.1}
  #allocation0 [shape = 'u32[]', space=smem, size = 0x4, offset = 0x4, fixed_abs, tag = 'smem constant byte address 0x4 - core index']
  #allocation1 [shape = 'u32[144,128]{1,0:T(1,128)}', space=vmem, size = 0x12000, scoped, tag = 'internal scratch']
  %s0 = inlined_call_operand.vmem [shape: bf16[128,16], index: 0, kind: input, shape index: {}]
  %s1 = inlined_call_operand.vmem [shape: bf16[256,16], index: 1, kind: input, shape index: {}]
  %s2 = inlined_call_operand.vmem [shape: bf16[128,128], index: 2, kind: input, shape index: {}]
  %s3 = inlined_call_operand.vmem [shape: f32[8,128], index: 3, kind: input, shape index: {}]
  %s4 = inlined_call_operand.hbm [shape: f32[16,128], index: 4, kind: output, shape index: {}]
  %s5 = sld [smem:[#allocation0]]
  $region26: #{tpu_custom_call.1} parent=0
    _
  %s7 = ssub.s32 1, %s5
  %s8 = scalar_select 0, %s7, %s5
  $region1: #{tpu_custom_call.1} parent=0
    #allocation2 [shape = 'u8[8192]{0}', space=vmem, size = 0x2000, scoped, tag = 'output window, operand 0, single buffered']
    #allocation3 [shape = 's32[1]{0}', space=sflag, size = 0x4, scoped, tag = 'scoped memory for tpu_custom_call.1']
    %9 = vsyncpa [#allocation3], 0
    // Predicated region
    $region2: #{tpu_custom_call.1} parent=1 // pred_check
      _
    $region3: #{tpu_custom_call.1} parent=1 // pred_check_branch
      %11 = sbr.rel (0) target = $region5
    $region4: #{tpu_custom_call.1} parent=1 // pred_region
      _
    $region5: #{tpu_custom_call.1} parent=1 // pred_fallthru
      _
    // Predicated region
    $region6: #{tpu_custom_call.1} parent=1 // pred_check
      _
    $region7: #{tpu_custom_call.1} parent=1 // pred_check_branch
      %13 = sbr.rel (0) target = $region9
    $region8: #{tpu_custom_call.1} parent=1 // pred_region
      _
    $region9: #{tpu_custom_call.1} parent=1 // pred_fallthru
      _
    // Predicated region
    $region10: #{tpu_custom_call.1} parent=1 // pred_check
      _
    $region11: #{tpu_custom_call.1} parent=1 // pred_check_branch
      %15 = sbr.rel (0) target = $region13
    $region12: #{tpu_custom_call.1} parent=1 // pred_region
      _
    $region13: #{tpu_custom_call.1} parent=1 // pred_fallthru
      _
    // Predicated region
    $region14: #{tpu_custom_call.1} parent=1 // pred_check
      _
    $region15: #{tpu_custom_call.1} parent=1 // pred_check_branch
      %17 = sbr.rel (0) target = $region17
    $region16: #{tpu_custom_call.1} parent=1 // pred_region
      _
    $region17: #{tpu_custom_call.1} parent=1 // pred_fallthru
      _
    %v19 = vld [vmem:[%s0] sm:$0xf]
    %v20 = vld [vmem:[%s0 + $0x4] sm:$0xf]
    %v21 = vld [vmem:[%s0 + $0x8] sm:$0xf]
    %v22 = vld [vmem:[%s0 + $0xc] sm:$0xf]
    %v23 = vld [vmem:[%s0 + $0x10] sm:$0xf]
    %v24 = vld [vmem:[%s0 + $0x14] sm:$0xf]
    %v25 = vld [vmem:[%s0 + $0x18] sm:$0xf]
    %v26 = vld [vmem:[%s0 + $0x1c] sm:$0xf]
    %v27 = vld [vmem:[%s0 + $0x20] sm:$0xf]
    %v28 = vld [vmem:[%s0 + $0x24] sm:$0xf]
    %v29 = vld [vmem:[%s0 + $0x28] sm:$0xf]
    %v30 = vld [vmem:[%s0 + $0x2c] sm:$0xf]
    %v31 = vld [vmem:[%s0 + $0x30] sm:$0xf]
    %v32 = vld [vmem:[%s0 + $0x34] sm:$0xf]
    %v33 = vld [vmem:[%s0 + $0x38] sm:$0xf]
    %v34 = vld [vmem:[%s0 + $0x3c] sm:$0xf]
    %v35 = vld [vmem:[%s2] sm:$0xf]
    %v36 = vld [vmem:[%s2 + $0x4] sm:$0xf]
    %v37 = vld [vmem:[%s3] sm:$0x1]
    %v38 = vlaneseq
    %v39 = vshrl.u32 %v38, 7
    %v40 = vsub.s32 0, %v39
    %v41 = vrot.slane %v37, %v40
    %v58 = vunpack.c.l.b16 %v19
    %v59 = vunpack.c.l.b16 %v20
    %v60 = vunpack.c.l.b16 %v21
    %v61 = vunpack.c.l.b16 %v22
    %v62 = vunpack.c.l.b16 %v23
    %v63 = vunpack.c.l.b16 %v24
    %v64 = vunpack.c.l.b16 %v25
    %v65 = vunpack.c.l.b16 %v26
    %v66 = vunpack.c.l.b16 %v27
    %v67 = vunpack.c.l.b16 %v28
    %v68 = vunpack.c.l.b16 %v29
    %v69 = vunpack.c.l.b16 %v30
    %v70 = vunpack.c.l.b16 %v31
    %v71 = vunpack.c.l.b16 %v32
    %v72 = vunpack.c.l.b16 %v33
    %v73 = vunpack.c.l.b16 %v34
    %v74 = vpack.c.b16 %v59, %v58
    %v75 = vpack.c.b16 %v61, %v60
    %v76 = vpack.c.b16 %v63, %v62
    %v77 = vpack.c.b16 %v65, %v64
    %v78 = vpack.c.b16 %v67, %v66
    %v79 = vpack.c.b16 %v69, %v68
    %v80 = vpack.c.b16 %v71, %v70
    %v81 = vpack.c.b16 %v73, %v72
    %v84 = vunpack.c.l.b16 %v35
    %v85 = vunpack.c.l.b16 %v36
    %v86 = vpack.c.b16 %v85, %v84
    %vm88 = vcmask 130048
    %v90 = vsel %vm88, %v74, 0
    %v93 = vsel %vm88, %v75, 0
    %v96 = vsel %vm88, %v76, 0
    %v99 = vsel %vm88, %v77, 0
    %v102 = vsel %vm88, %v78, 0
    %v105 = vsel %vm88, %v79, 0
    %v108 = vsel %vm88, %v80, 0
    %v111 = vsel %vm88, %v81, 0
    %113 = vmatprep.subr.bf16.mxu0 0
    %114 = vmatpush1.bf16.msra.mxu0 %v86
    %115 = vmatprep.subr.bf16.mxu0 0
    %116 = vmatpush1.bf16.msra.mxu0 0
    %117 = vmatprep.subr.bf16.mxu0 0
    %118 = vmatpush1.bf16.msra.mxu0 0
    %119 = vmatprep.subr.bf16.mxu0 0
    %120 = vmatpush1.bf16.msra.mxu0 0
    %121 = vmatprep.subr.bf16.mxu0 0
    %122 = vmatpush1.bf16.msra.mxu0 0
    %123 = vmatprep.subr.bf16.mxu0 0
    %124 = vmatpush1.bf16.msra.mxu0 0
    %125 = vmatprep.subr.bf16.mxu0 0
    %126 = vmatpush1.bf16.msra.mxu0 0
    %127 = vmatprep.subr.bf16.mxu0 0
    %128 = vmatpush1.bf16.msra.mxu0 0
    %129 = vmatprep.subr.bf16.mxu0 0
    %130 = vmatpush1.bf16.msra.mxu0 0
    %131 = vmatprep.subr.bf16.mxu0 0
    %132 = vmatpush1.bf16.msra.mxu0 0
    %133 = vmatprep.subr.bf16.mxu0 0
    %134 = vmatpush1.bf16.msra.mxu0 0
    %135 = vmatprep.subr.bf16.mxu0 0
    %136 = vmatpush1.bf16.msra.mxu0 0
    %137 = vmatprep.subr.bf16.mxu0 0
    %138 = vmatpush1.bf16.msra.mxu0 0
    %139 = vmatprep.subr.bf16.mxu0 0
    %140 = vmatpush1.bf16.msra.mxu0 0
    %141 = vmatprep.subr.bf16.mxu0 0
    %142 = vmatpush1.bf16.msra.mxu0 0
    %143 = vmatprep.subr.bf16.mxu0 0
    %144 = vmatpush1.bf16.msra.mxu0 0
    %145 = vmatprep.mubr.bf16.mxu0 0
    %146 = vmatmul.mubr.bf16.gmra.mrb[0].mxu0 %v90
    %v147 = vpop.f32.mrb[0].mxu0
    %v148 = vadd.f32 %v41, %v147
    %v149 = vpop.f32.mrb[0].mxu0
    %v150 = vpop.f32.mrb[0].mxu0
    %v151 = vadd.f32 %v41, %v150
    %v152 = vpop.f32.mrb[0].mxu0
    %153 = vmatprep.mubr.bf16.mxu0 0
    %154 = vmatmul.mubr.bf16.gmra.mrb[0].mxu0 %v93
    %v155 = vpop.f32.mrb[0].mxu0
    %v156 = vadd.f32 %v41, %v155
    %v157 = vpop.f32.mrb[0].mxu0
    %v158 = vpop.f32.mrb[0].mxu0
    %v159 = vadd.f32 %v41, %v158
    %v160 = vpop.f32.mrb[0].mxu0
    %161 = vmatprep.mubr.bf16.mxu0 0
    %162 = vmatmul.mubr.bf16.gmra.mrb[0].mxu0 %v96
    %v163 = vpop.f32.mrb[0].mxu0
    %v164 = vadd.f32 %v41, %v163
    %v165 = vpop.f32.mrb[0].mxu0
    %v166 = vpop.f32.mrb[0].mxu0
    %v167 = vadd.f32 %v41, %v166
    %v168 = vpop.f32.mrb[0].mxu0
    %169 = vmatprep.mubr.bf16.mxu0 0
    %170 = vmatmul.mubr.bf16.gmra.mrb[0].mxu0 %v99
    %v171 = vpop.f32.mrb[0].mxu0
    %v172 = vadd.f32 %v41, %v171
    %v173 = vpop.f32.mrb[0].mxu0
    %v174 = vpop.f32.mrb[0].mxu0
    %v175 = vadd.f32 %v41, %v174
    %v176 = vpop.f32.mrb[0].mxu0
    %177 = vmatprep.mubr.bf16.mxu0 0
    %178 = vmatmul.mubr.bf16.gmra.mrb[0].mxu0 %v102
    %v179 = vpop.f32.mrb[0].mxu0
    %v180 = vadd.f32 %v41, %v179
    %v181 = vpop.f32.mrb[0].mxu0
    %v182 = vpop.f32.mrb[0].mxu0
    %v183 = vadd.f32 %v41, %v182
    %v184 = vpop.f32.mrb[0].mxu0
    %185 = vmatprep.mubr.bf16.mxu0 0
    %186 = vmatmul.mubr.bf16.gmra.mrb[0].mxu0 %v105
    %v187 = vpop.f32.mrb[0].mxu0
    %v188 = vadd.f32 %v41, %v187
    %v189 = vpop.f32.mrb[0].mxu0
    %v190 = vpop.f32.mrb[0].mxu0
    %v191 = vadd.f32 %v41, %v190
    %v192 = vpop.f32.mrb[0].mxu0
    %193 = vmatprep.mubr.bf16.mxu0 0
    %194 = vmatmul.mubr.bf16.gmra.mrb[0].mxu0 %v108
    %v195 = vpop.f32.mrb[0].mxu0
    %v196 = vadd.f32 %v41, %v195
    %v197 = vpop.f32.mrb[0].mxu0
    %v198 = vpop.f32.mrb[0].mxu0
    %v199 = vadd.f32 %v41, %v198
    %v200 = vpop.f32.mrb[0].mxu0
    %201 = vmatprep.mubr.bf16.mxu0 0
    %202 = vmatmul.mubr.bf16.gmra.mrb[0].mxu0 %v111
    %v203 = vpop.f32.mrb[0].mxu0
    %v204 = vadd.f32 %v41, %v203
    %v205 = vpop.f32.mrb[0].mxu0
    %v206 = vpop.f32.mrb[0].mxu0
    %v207 = vadd.f32 %v41, %v206
    %v208 = vpop.f32.mrb[0].mxu0
    %209 = vdwg.mxu0
    %v210 = vmax.f32 %v148, 0.0
    %v211 = vmax.f32 %v151, 0.0
    %v212 = vmax.f32 %v156, 0.0
    %v213 = vmax.f32 %v159, 0.0
    %v214 = vmax.f32 %v164, 0.0
    %v215 = vmax.f32 %v167, 0.0
    %v216 = vmax.f32 %v172, 0.0
    %v217 = vmax.f32 %v175, 0.0
    %v218 = vmax.f32 %v180, 0.0
    %v219 = vmax.f32 %v183, 0.0
    %v220 = vmax.f32 %v188, 0.0
    %v221 = vmax.f32 %v191, 0.0
    %v222 = vmax.f32 %v196, 0.0
    %v223 = vmax.f32 %v199, 0.0
    %v224 = vmax.f32 %v204, 0.0
    %v225 = vmax.f32 %v207, 0.0
    %v226 = vpack.c.bf16 %v211, %v210
    %v227 = vpack.c.bf16 %v213, %v212
    %v228 = vpack.c.bf16 %v215, %v214
    %v229 = vpack.c.bf16 %v217, %v216
    %v230 = vpack.c.bf16 %v219, %v218
    %v231 = vpack.c.bf16 %v221, %v220
    %v232 = vpack.c.bf16 %v223, %v222
    %v233 = vpack.c.bf16 %v225, %v224
    %v234 = vld [vmem:[%s2 + $0x8] sm:$0xf]
    %v235 = vld [vmem:[%s2 + $0xc] sm:$0xf]
    %v236 = vld [vmem:[%s3 + $0x1] sm:$0x1]
    %v237 = vlaneseq
    %v238 = vshrl.u32 %v237, 7
    %v239 = vsub.s32 0, %v238
    %v240 = vrot.slane %v236, %v239
    %v243 = vunpack.c.l.b16 %v234
    %v244 = vunpack.c.l.b16 %v235
    %v245 = vpack.c.b16 %v244, %v243
    %v248 = vsel %vm88, %v226, 0
    %v251 = vsel %vm88, %v227, 0
    %v254 = vsel %vm88, %v228, 0
    %v257 = vsel %vm88, %v229, 0
    %v260 = vsel %vm88, %v230, 0
    %v263 = vsel %vm88, %v231, 0
    %v266 = vsel %vm88, %v232, 0
    %v269 = vsel %vm88, %v233, 0
    %271 = vmatprep.subr.bf16.mxu0 0
    %272 = vmatpush1.bf16.msra.mxu0 %v245
    %273 = vmatprep.subr.bf16.mxu0 0
    %274 = vmatpush1.bf16.msra.mxu0 0
    %275 = vmatprep.subr.bf16.mxu0 0
    %276 = vmatpush1.bf16.msra.mxu0 0
    %277 = vmatprep.subr.bf16.mxu0 0
    %278 = vmatpush1.bf16.msra.mxu0 0
    %279 = vmatprep.subr.bf16.mxu0 0
    %280 = vmatpush1.bf16.msra.mxu0 0
    %281 = vmatprep.subr.bf16.mxu0 0
    %282 = vmatpush1.bf16.msra.mxu0 0
    %283 = vmatprep.subr.bf16.mxu0 0
    %284 = vmatpush1.bf16.msra.mxu0 0
    %285 = vmatprep.subr.bf16.mxu0 0
    %286 = vmatpush1.bf16.msra.mxu0 0
    %287 = vmatprep.subr.bf16.mxu0 0
    %288 = vmatpush1.bf16.msra.mxu0 0
    %289 = vmatprep.subr.bf16.mxu0 0
    %290 = vmatpush1.bf16.msra.mxu0 0
    %291 = vmatprep.subr.bf16.mxu0 0
    %292 = vmatpush1.bf16.msra.mxu0 0
    %293 = vmatprep.subr.bf16.mxu0 0
    %294 = vmatpush1.bf16.msra.mxu0 0
    %295 = vmatprep.subr.bf16.mxu0 0
    %296 = vmatpush1.bf16.msra.mxu0 0
    %297 = vmatprep.subr.bf16.mxu0 0
    %298 = vmatpush1.bf16.msra.mxu0 0
    %299 = vmatprep.subr.bf16.mxu0 0
    %300 = vmatpush1.bf16.msra.mxu0 0
    %301 = vmatprep.subr.bf16.mxu0 0
    %302 = vmatpush1.bf16.msra.mxu0 0
    %303 = vmatprep.mubr.bf16.mxu0 0
    %304 = vmatmul.mubr.bf16.gmra.mrb[0].mxu0 %v248
    %v305 = vpop.f32.mrb[0].mxu0
    %v306 = vadd.f32 %v240, %v305
    %v307 = vpop.f32.mrb[0].mxu0
    %v308 = vpop.f32.mrb[0].mxu0
    %v309 = vadd.f32 %v240, %v308
    %v310 = vpop.f32.mrb[0].mxu0
    %311 = vmatprep.mubr.bf16.mxu0 0
    %312 = vmatmul.mubr.bf16.gmra.mrb[0].mxu0 %v251
    %v313 = vpop.f32.mrb[0].mxu0
    %v314 = vadd.f32 %v240, %v313
    %v315 = vpop.f32.mrb[0].mxu0
    %v316 = vpop.f32.mrb[0].mxu0
    %v317 = vadd.f32 %v240, %v316
    %v318 = vpop.f32.mrb[0].mxu0
    %319 = vmatprep.mubr.bf16.mxu0 0
    %320 = vmatmul.mubr.bf16.gmra.mrb[0].mxu0 %v254
    %v321 = vpop.f32.mrb[0].mxu0
    %v322 = vadd.f32 %v240, %v321
    %v323 = vpop.f32.mrb[0].mxu0
    %v324 = vpop.f32.mrb[0].mxu0
    %v325 = vadd.f32 %v240, %v324
    %v326 = vpop.f32.mrb[0].mxu0
    %327 = vmatprep.mubr.bf16.mxu0 0
    %328 = vmatmul.mubr.bf16.gmra.mrb[0].mxu0 %v257
    %v329 = vpop.f32.mrb[0].mxu0
    %v330 = vadd.f32 %v240, %v329
    %v331 = vpop.f32.mrb[0].mxu0
    %v332 = vpop.f32.mrb[0].mxu0
    %v333 = vadd.f32 %v240, %v332
    %v334 = vpop.f32.mrb[0].mxu0
    %335 = vmatprep.mubr.bf16.mxu0 0
    %336 = vmatmul.mubr.bf16.gmra.mrb[0].mxu0 %v260
    %v337 = vpop.f32.mrb[0].mxu0
    %v338 = vadd.f32 %v240, %v337
    %v339 = vpop.f32.mrb[0].mxu0
    %v340 = vpop.f32.mrb[0].mxu0
    %v341 = vadd.f32 %v240, %v340
    %v342 = vpop.f32.mrb[0].mxu0
    %343 = vmatprep.mubr.bf16.mxu0 0
    %344 = vmatmul.mubr.bf16.gmra.mrb[0].mxu0 %v263
    %v345 = vpop.f32.mrb[0].mxu0
    %v346 = vadd.f32 %v240, %v345
    %v347 = vpop.f32.mrb[0].mxu0
    %v348 = vpop.f32.mrb[0].mxu0
    %v349 = vadd.f32 %v240, %v348
    %v350 = vpop.f32.mrb[0].mxu0
    %351 = vmatprep.mubr.bf16.mxu0 0
    %352 = vmatmul.mubr.bf16.gmra.mrb[0].mxu0 %v266
    %v353 = vpop.f32.mrb[0].mxu0
    %v354 = vadd.f32 %v240, %v353
    %v355 = vpop.f32.mrb[0].mxu0
    %v356 = vpop.f32.mrb[0].mxu0
    %v357 = vadd.f32 %v240, %v356
    %v358 = vpop.f32.mrb[0].mxu0
    %359 = vmatprep.mubr.bf16.mxu0 0
    %360 = vmatmul.mubr.bf16.gmra.mrb[0].mxu0 %v269
    %v361 = vpop.f32.mrb[0].mxu0
    %v362 = vadd.f32 %v240, %v361
    %v363 = vpop.f32.mrb[0].mxu0
    %v364 = vpop.f32.mrb[0].mxu0
    %v365 = vadd.f32 %v240, %v364
    %v366 = vpop.f32.mrb[0].mxu0
    %367 = vdwg.mxu0
    %v368 = vmax.f32 %v306, 0.0
    %v369 = vmax.f32 %v309, 0.0
    %v370 = vmax.f32 %v314, 0.0
    %v371 = vmax.f32 %v317, 0.0
    %v372 = vmax.f32 %v322, 0.0
    %v373 = vmax.f32 %v325, 0.0
    %v374 = vmax.f32 %v330, 0.0
    %v375 = vmax.f32 %v333, 0.0
    %v376 = vmax.f32 %v338, 0.0
    %v377 = vmax.f32 %v341, 0.0
    %v378 = vmax.f32 %v346, 0.0
    %v379 = vmax.f32 %v349, 0.0
    %v380 = vmax.f32 %v354, 0.0
    %v381 = vmax.f32 %v357, 0.0
    %v382 = vmax.f32 %v362, 0.0
    %v383 = vmax.f32 %v365, 0.0
    %v384 = vpack.c.bf16 %v369, %v368
    %v385 = vpack.c.bf16 %v371, %v370
    %v386 = vpack.c.bf16 %v373, %v372
    %v387 = vpack.c.bf16 %v375, %v374
    %v388 = vpack.c.bf16 %v377, %v376
    %v389 = vpack.c.bf16 %v379, %v378
    %v390 = vpack.c.bf16 %v381, %v380
    %v391 = vpack.c.bf16 %v383, %v382
    %v392 = vld [vmem:[%s2 + $0x10] sm:$0xf]
    %v393 = vld [vmem:[%s2 + $0x14] sm:$0xf]
    %v394 = vld [vmem:[%s3 + $0x2] sm:$0x1]
    %v395 = vlaneseq
    %v396 = vshrl.u32 %v395, 7
    %v397 = vsub.s32 0, %v396
    %v398 = vrot.slane %v394, %v397
    %v401 = vunpack.c.l.b16 %v392
    %v402 = vunpack.c.l.b16 %v393
    %v403 = vpack.c.b16 %v402, %v401
    %v406 = vsel %vm88, %v384, 0
    %v409 = vsel %vm88, %v385, 0
    %v412 = vsel %vm88, %v386, 0
    %v415 = vsel %vm88, %v387, 0
    %v418 = vsel %vm88, %v388, 0
    %v421 = vsel %vm88, %v389, 0
    %v424 = vsel %vm88, %v390, 0
    %v427 = vsel %vm88, %v391, 0
    %429 = vmatprep.subr.bf16.mxu0 0
    %430 = vmatpush1.bf16.msra.mxu0 %v403
    %431 = vmatprep.subr.bf16.mxu0 0
    %432 = vmatpush1.bf16.msra.mxu0 0
    %433 = vmatprep.subr.bf16.mxu0 0
    %434 = vmatpush1.bf16.msra.mxu0 0
    %435 = vmatprep.subr.bf16.mxu0 0
    %436 = vmatpush1.bf16.msra.mxu0 0
    %437 = vmatprep.subr.bf16.mxu0 0
    %438 = vmatpush1.bf16.msra.mxu0 0
    %439 = vmatprep.subr.bf16.mxu0 0
    %440 = vmatpush1.bf16.msra.mxu0 0
    %441 = vmatprep.subr.bf16.mxu0 0
    %442 = vmatpush1.bf16.msra.mxu0 0
    %443 = vmatprep.subr.bf16.mxu0 0
    %444 = vmatpush1.bf16.msra.mxu0 0
    %445 = vmatprep.subr.bf16.mxu0 0
    %446 = vmatpush1.bf16.msra.mxu0 0
    %447 = vmatprep.subr.bf16.mxu0 0
    %448 = vmatpush1.bf16.msra.mxu0 0
    %449 = vmatprep.subr.bf16.mxu0 0
    %450 = vmatpush1.bf16.msra.mxu0 0
    %451 = vmatprep.subr.bf16.mxu0 0
    %452 = vmatpush1.bf16.msra.mxu0 0
    %453 = vmatprep.subr.bf16.mxu0 0
    %454 = vmatpush1.bf16.msra.mxu0 0
    %455 = vmatprep.subr.bf16.mxu0 0
    %456 = vmatpush1.bf16.msra.mxu0 0
    %457 = vmatprep.subr.bf16.mxu0 0
    %458 = vmatpush1.bf16.msra.mxu0 0
    %459 = vmatprep.subr.bf16.mxu0 0
    %460 = vmatpush1.bf16.msra.mxu0 0
    %461 = vmatprep.mubr.bf16.mxu0 0
    %462 = vmatmul.mubr.bf16.gmra.mrb[0].mxu0 %v406
    %v463 = vpop.f32.mrb[0].mxu0
    %v464 = vadd.f32 %v398, %v463
    %v465 = vpop.f32.mrb[0].mxu0
    %v466 = vpop.f32.mrb[0].mxu0
    %v467 = vadd.f32 %v398, %v466
    %v468 = vpop.f32.mrb[0].mxu0
    %469 = vmatprep.mubr.bf16.mxu0 0
    %470 = vmatmul.mubr.bf16.gmra.mrb[0].mxu0 %v409
    %v471 = vpop.f32.mrb[0].mxu0
    %v472 = vadd.f32 %v398, %v471
    %v473 = vpop.f32.mrb[0].mxu0
    %v474 = vpop.f32.mrb[0].mxu0
    %v475 = vadd.f32 %v398, %v474
    %v476 = vpop.f32.mrb[0].mxu0
    %477 = vmatprep.mubr.bf16.mxu0 0
    %478 = vmatmul.mubr.bf16.gmra.mrb[0].mxu0 %v412
    %v479 = vpop.f32.mrb[0].mxu0
    %v480 = vadd.f32 %v398, %v479
    %v481 = vpop.f32.mrb[0].mxu0
    %v482 = vpop.f32.mrb[0].mxu0
    %v483 = vadd.f32 %v398, %v482
    %v484 = vpop.f32.mrb[0].mxu0
    %485 = vmatprep.mubr.bf16.mxu0 0
    %486 = vmatmul.mubr.bf16.gmra.mrb[0].mxu0 %v415
    %v487 = vpop.f32.mrb[0].mxu0
    %v488 = vadd.f32 %v398, %v487
    %v489 = vpop.f32.mrb[0].mxu0
    %v490 = vpop.f32.mrb[0].mxu0
    %v491 = vadd.f32 %v398, %v490
    %v492 = vpop.f32.mrb[0].mxu0
    %493 = vmatprep.mubr.bf16.mxu0 0
    %494 = vmatmul.mubr.bf16.gmra.mrb[0].mxu0 %v418
    %v495 = vpop.f32.mrb[0].mxu0
    %v496 = vadd.f32 %v398, %v495
    %v497 = vpop.f32.mrb[0].mxu0
    %v498 = vpop.f32.mrb[0].mxu0
    %v499 = vadd.f32 %v398, %v498
    %v500 = vpop.f32.mrb[0].mxu0
    %501 = vmatprep.mubr.bf16.mxu0 0
    %502 = vmatmul.mubr.bf16.gmra.mrb[0].mxu0 %v421
    %v503 = vpop.f32.mrb[0].mxu0
    %v504 = vadd.f32 %v398, %v503
    %v505 = vpop.f32.mrb[0].mxu0
    %v506 = vpop.f32.mrb[0].mxu0
    %v507 = vadd.f32 %v398, %v506
    %v508 = vpop.f32.mrb[0].mxu0
    %509 = vmatprep.mubr.bf16.mxu0 0
    %510 = vmatmul.mubr.bf16.gmra.mrb[0].mxu0 %v424
    %v511 = vpop.f32.mrb[0].mxu0
    %v512 = vadd.f32 %v398, %v511
    %v513 = vpop.f32.mrb[0].mxu0
    %v514 = vpop.f32.mrb[0].mxu0
    %v515 = vadd.f32 %v398, %v514
    %v516 = vpop.f32.mrb[0].mxu0
    %517 = vmatprep.mubr.bf16.mxu0 0
    %518 = vmatmul.mubr.bf16.gmra.mrb[0].mxu0 %v427
    %v519 = vpop.f32.mrb[0].mxu0
    %v520 = vadd.f32 %v398, %v519
    %v521 = vpop.f32.mrb[0].mxu0
    %v522 = vpop.f32.mrb[0].mxu0
    %v523 = vadd.f32 %v398, %v522
    %v524 = vpop.f32.mrb[0].mxu0
    %525 = vdwg.mxu0
    %v526 = vmax.f32 %v464, 0.0
    %v527 = vmax.f32 %v467, 0.0
    %v528 = vmax.f32 %v472, 0.0
    %v529 = vmax.f32 %v475, 0.0
    %v530 = vmax.f32 %v480, 0.0
    %v531 = vmax.f32 %v483, 0.0
    %v532 = vmax.f32 %v488, 0.0
    %v533 = vmax.f32 %v491, 0.0
    %v534 = vmax.f32 %v496, 0.0
    %v535 = vmax.f32 %v499, 0.0
    %v536 = vmax.f32 %v504, 0.0
    %v537 = vmax.f32 %v507, 0.0
    %v538 = vmax.f32 %v512, 0.0
    %v539 = vmax.f32 %v515, 0.0
    %v540 = vmax.f32 %v520, 0.0
    %v541 = vmax.f32 %v523, 0.0
    %v542 = vrot.slane %v526, 4
    %v543 = vmax.f32 %v526, %v542
    %v544 = vrot.slane %v543, 2
    %v545 = vmax.f32 %v543, %v544
    %v546 = vrot.slane %v545, 1
    %v547 = vmax.f32 %v545, %v546
    %v548 = vrot.slane %v527, 4
    %v549 = vmax.f32 %v527, %v548
    %v550 = vrot.slane %v549, 2
    %v551 = vmax.f32 %v549, %v550
    %v552 = vrot.slane %v551, 1
    %v553 = vmax.f32 %v551, %v552
    %v554 = vrot.slane %v528, 4
    %v555 = vmax.f32 %v528, %v554
    %v556 = vrot.slane %v555, 2
    %v557 = vmax.f32 %v555, %v556
    %v558 = vrot.slane %v557, 1
    %v559 = vmax.f32 %v557, %v558
    %v560 = vrot.slane %v529, 4
    %v561 = vmax.f32 %v529, %v560
    %v562 = vrot.slane %v561, 2
    %v563 = vmax.f32 %v561, %v562
    %v564 = vrot.slane %v563, 1
    %v565 = vmax.f32 %v563, %v564
    %v566 = vrot.slane %v530, 4
    %v567 = vmax.f32 %v530, %v566
    %v568 = vrot.slane %v567, 2
    %v569 = vmax.f32 %v567, %v568
    %v570 = vrot.slane %v569, 1
    %v571 = vmax.f32 %v569, %v570
    %v572 = vrot.slane %v531, 4
    %v573 = vmax.f32 %v531, %v572
    %v574 = vrot.slane %v573, 2
    %v575 = vmax.f32 %v573, %v574
    %v576 = vrot.slane %v575, 1
    %v577 = vmax.f32 %v575, %v576
    %v578 = vrot.slane %v532, 4
    %v579 = vmax.f32 %v532, %v578
    %v580 = vrot.slane %v579, 2
    %v581 = vmax.f32 %v579, %v580
    %v582 = vrot.slane %v581, 1
    %v583 = vmax.f32 %v581, %v582
    %v584 = vrot.slane %v533, 4
    %v585 = vmax.f32 %v533, %v584
    %v586 = vrot.slane %v585, 2
    %v587 = vmax.f32 %v585, %v586
    %v588 = vrot.slane %v587, 1
    %v589 = vmax.f32 %v587, %v588
    %v590 = vrot.slane %v534, 4
    %v591 = vmax.f32 %v534, %v590
    %v592 = vrot.slane %v591, 2
    %v593 = vmax.f32 %v591, %v592
    %v594 = vrot.slane %v593, 1
    %v595 = vmax.f32 %v593, %v594
    %v596 = vrot.slane %v535, 4
    %v597 = vmax.f32 %v535, %v596
    %v598 = vrot.slane %v597, 2
    %v599 = vmax.f32 %v597, %v598
    %v600 = vrot.slane %v599, 1
    %v601 = vmax.f32 %v599, %v600
    %v602 = vrot.slane %v536, 4
    %v603 = vmax.f32 %v536, %v602
    %v604 = vrot.slane %v603, 2
    %v605 = vmax.f32 %v603, %v604
    %v606 = vrot.slane %v605, 1
    %v607 = vmax.f32 %v605, %v606
    %v608 = vrot.slane %v537, 4
    %v609 = vmax.f32 %v537, %v608
    %v610 = vrot.slane %v609, 2
    %v611 = vmax.f32 %v609, %v610
    %v612 = vrot.slane %v611, 1
    %v613 = vmax.f32 %v611, %v612
    %v614 = vrot.slane %v538, 4
    %v615 = vmax.f32 %v538, %v614
    %v616 = vrot.slane %v615, 2
    %v617 = vmax.f32 %v615, %v616
    %v618 = vrot.slane %v617, 1
    %v619 = vmax.f32 %v617, %v618
    %v620 = vrot.slane %v539, 4
    %v621 = vmax.f32 %v539, %v620
    %v622 = vrot.slane %v621, 2
    %v623 = vmax.f32 %v621, %v622
    %v624 = vrot.slane %v623, 1
    %v625 = vmax.f32 %v623, %v624
    %v626 = vrot.slane %v540, 4
    %v627 = vmax.f32 %v540, %v626
    %v628 = vrot.slane %v627, 2
    %v629 = vmax.f32 %v627, %v628
    %v630 = vrot.slane %v629, 1
    %v631 = vmax.f32 %v629, %v630
    %v632 = vrot.slane %v541, 4
    %v633 = vmax.f32 %v541, %v632
    %v634 = vrot.slane %v633, 2
    %v635 = vmax.f32 %v633, %v634
    %v636 = vrot.slane %v635, 1
    %v637 = vmax.f32 %v635, %v636
    %v638 = vadd.f32 %v547, 0.0
    %v639 = vadd.f32 %v553, 0.0
    %v640 = vadd.f32 %v559, 0.0
    %v641 = vadd.f32 %v565, 0.0
    %v642 = vadd.f32 %v571, 0.0
    %v643 = vadd.f32 %v577, 0.0
    %v644 = vadd.f32 %v583, 0.0
    %v645 = vadd.f32 %v589, 0.0
    %v646 = vadd.f32 %v595, 0.0
    %v647 = vadd.f32 %v601, 0.0
    %v648 = vadd.f32 %v607, 0.0
    %v649 = vadd.f32 %v613, 0.0
    %v650 = vadd.f32 %v619, 0.0
    %v651 = vadd.f32 %v625, 0.0
    %v652 = vadd.f32 %v631, 0.0
    %v653 = vadd.f32 %v637, 0.0
    %v654 = vld [vmem:[%s1] sm:$0xf]
    %v655 = vld [vmem:[%s1 + $0x4] sm:$0xf]
    %v656 = vld [vmem:[%s1 + $0x8] sm:$0xf]
    %v657 = vld [vmem:[%s1 + $0xc] sm:$0xf]
    %v658 = vld [vmem:[%s1 + $0x10] sm:$0xf]
    %v659 = vld [vmem:[%s1 + $0x14] sm:$0xf]
    %v660 = vld [vmem:[%s1 + $0x18] sm:$0xf]
    %v661 = vld [vmem:[%s1 + $0x1c] sm:$0xf]
    %v662 = vld [vmem:[%s1 + $0x20] sm:$0xf]
    %v663 = vld [vmem:[%s1 + $0x24] sm:$0xf]
    %v664 = vld [vmem:[%s1 + $0x28] sm:$0xf]
    %v665 = vld [vmem:[%s1 + $0x2c] sm:$0xf]
    %v666 = vld [vmem:[%s1 + $0x30] sm:$0xf]
    %v667 = vld [vmem:[%s1 + $0x34] sm:$0xf]
    %v668 = vld [vmem:[%s1 + $0x38] sm:$0xf]
    %v669 = vld [vmem:[%s1 + $0x3c] sm:$0xf]
    %v670 = vld [vmem:[%s1 + $0x40] sm:$0xf]
    %v671 = vld [vmem:[%s1 + $0x44] sm:$0xf]
    %v672 = vld [vmem:[%s1 + $0x48] sm:$0xf]
    %v673 = vld [vmem:[%s1 + $0x4c] sm:$0xf]
    %v674 = vld [vmem:[%s1 + $0x50] sm:$0xf]
    %v675 = vld [vmem:[%s1 + $0x54] sm:$0xf]
    %v676 = vld [vmem:[%s1 + $0x58] sm:$0xf]
    %v677 = vld [vmem:[%s1 + $0x5c] sm:$0xf]
    %v678 = vld [vmem:[%s1 + $0x60] sm:$0xf]
    %v679 = vld [vmem:[%s1 + $0x64] sm:$0xf]
    %v680 = vld [vmem:[%s1 + $0x68] sm:$0xf]
    %v681 = vld [vmem:[%s1 + $0x6c] sm:$0xf]
    %v682 = vld [vmem:[%s1 + $0x70] sm:$0xf]
    %v683 = vld [vmem:[%s1 + $0x74] sm:$0xf]
    %v684 = vld [vmem:[%s1 + $0x78] sm:$0xf]
    %v685 = vld [vmem:[%s1 + $0x7c] sm:$0xf]
    %v686 = vld [vmem:[%s2 + $0x18] sm:$0xf]
    %v687 = vld [vmem:[%s2 + $0x1c] sm:$0xf]
    %v688 = vld [vmem:[%s3 + $0x3] sm:$0x1]
    %v689 = vlaneseq
    %v690 = vshrl.u32 %v689, 7
    %v691 = vsub.s32 0, %v690
    %v692 = vrot.slane %v688, %v691
    %v725 = vunpack.c.l.b16 %v654
    %v726 = vunpack.c.l.b16 %v655
    %v727 = vunpack.c.l.b16 %v656
    %v728 = vunpack.c.l.b16 %v657
    %v729 = vunpack.c.l.b16 %v658
    %v730 = vunpack.c.l.b16 %v659
    %v731 = vunpack.c.l.b16 %v660
    %v732 = vunpack.c.l.b16 %v661
    %v733 = vunpack.c.l.b16 %v662
    %v734 = vunpack.c.l.b16 %v663
    %v735 = vunpack.c.l.b16 %v664
    %v736 = vunpack.c.l.b16 %v665
    %v737 = vunpack.c.l.b16 %v666
    %v738 = vunpack.c.l.b16 %v667
    %v739 = vunpack.c.l.b16 %v668
    %v740 = vunpack.c.l.b16 %v669
    %v741 = vunpack.c.l.b16 %v670
    %v742 = vunpack.c.l.b16 %v671
    %v743 = vunpack.c.l.b16 %v672
    %v744 = vunpack.c.l.b16 %v673
    %v745 = vunpack.c.l.b16 %v674
    %v746 = vunpack.c.l.b16 %v675
    %v747 = vunpack.c.l.b16 %v676
    %v748 = vunpack.c.l.b16 %v677
    %v749 = vunpack.c.l.b16 %v678
    %v750 = vunpack.c.l.b16 %v679
    %v751 = vunpack.c.l.b16 %v680
    %v752 = vunpack.c.l.b16 %v681
    %v753 = vunpack.c.l.b16 %v682
    %v754 = vunpack.c.l.b16 %v683
    %v755 = vunpack.c.l.b16 %v684
    %v756 = vunpack.c.l.b16 %v685
    %v757 = vpack.c.b16 %v726, %v725
    %v758 = vpack.c.b16 %v728, %v727
    %v759 = vpack.c.b16 %v730, %v729
    %v760 = vpack.c.b16 %v732, %v731
    %v761 = vpack.c.b16 %v734, %v733
    %v762 = vpack.c.b16 %v736, %v735
    %v763 = vpack.c.b16 %v738, %v737
    %v764 = vpack.c.b16 %v740, %v739
    %v765 = vpack.c.b16 %v742, %v741
    %v766 = vpack.c.b16 %v744, %v743
    %v767 = vpack.c.b16 %v746, %v745
    %v768 = vpack.c.b16 %v748, %v747
    %v769 = vpack.c.b16 %v750, %v749
    %v770 = vpack.c.b16 %v752, %v751
    %v771 = vpack.c.b16 %v754, %v753
    %v772 = vpack.c.b16 %v756, %v755
    %v775 = vunpack.c.l.b16 %v686
    %v776 = vunpack.c.l.b16 %v687
    %v777 = vpack.c.b16 %v776, %v775
    %v780 = vsel %vm88, %v757, 0
    %v783 = vsel %vm88, %v758, 0
    %v786 = vsel %vm88, %v759, 0
    %v789 = vsel %vm88, %v760, 0
    %v792 = vsel %vm88, %v761, 0
    %v795 = vsel %vm88, %v762, 0
    %v798 = vsel %vm88, %v763, 0
    %v801 = vsel %vm88, %v764, 0
    %v804 = vsel %vm88, %v765, 0
    %v807 = vsel %vm88, %v766, 0
    %v810 = vsel %vm88, %v767, 0
    %v813 = vsel %vm88, %v768, 0
    %v816 = vsel %vm88, %v769, 0
    %v819 = vsel %vm88, %v770, 0
    %v822 = vsel %vm88, %v771, 0
    %v825 = vsel %vm88, %v772, 0
    %827 = vmatprep.subr.bf16.mxu0 0
    %828 = vmatpush1.bf16.msra.mxu0 %v777
    %829 = vmatprep.subr.bf16.mxu0 0
    %830 = vmatpush1.bf16.msra.mxu0 0
    %831 = vmatprep.subr.bf16.mxu0 0
    %832 = vmatpush1.bf16.msra.mxu0 0
    %833 = vmatprep.subr.bf16.mxu0 0
    %834 = vmatpush1.bf16.msra.mxu0 0
    %835 = vmatprep.subr.bf16.mxu0 0
    %836 = vmatpush1.bf16.msra.mxu0 0
    %837 = vmatprep.subr.bf16.mxu0 0
    %838 = vmatpush1.bf16.msra.mxu0 0
    %839 = vmatprep.subr.bf16.mxu0 0
    %840 = vmatpush1.bf16.msra.mxu0 0
    %841 = vmatprep.subr.bf16.mxu0 0
    %842 = vmatpush1.bf16.msra.mxu0 0
    %843 = vmatprep.subr.bf16.mxu0 0
    %844 = vmatpush1.bf16.msra.mxu0 0
    %845 = vmatprep.subr.bf16.mxu0 0
    %846 = vmatpush1.bf16.msra.mxu0 0
    %847 = vmatprep.subr.bf16.mxu0 0
    %848 = vmatpush1.bf16.msra.mxu0 0
    %849 = vmatprep.subr.bf16.mxu0 0
    %850 = vmatpush1.bf16.msra.mxu0 0
    %851 = vmatprep.subr.bf16.mxu0 0
    %852 = vmatpush1.bf16.msra.mxu0 0
    %853 = vmatprep.subr.bf16.mxu0 0
    %854 = vmatpush1.bf16.msra.mxu0 0
    %855 = vmatprep.subr.bf16.mxu0 0
    %856 = vmatpush1.bf16.msra.mxu0 0
    %857 = vmatprep.subr.bf16.mxu0 0
    %858 = vmatpush1.bf16.msra.mxu0 0
    %859 = vmatprep.mubr.bf16.mxu0 0
    %860 = vmatmul.mubr.bf16.gmra.mrb[0].mxu0 %v780
    %v861 = vpop.f32.mrb[0].mxu0
    %v862 = vadd.f32 %v692, %v861
    %v863 = vpop.f32.mrb[0].mxu0
    %v864 = vpop.f32.mrb[0].mxu0
    %v865 = vadd.f32 %v692, %v864
    %v866 = vpop.f32.mrb[0].mxu0
    %867 = vmatprep.mubr.bf16.mxu0 0
    %868 = vmatmul.mubr.bf16.gmra.mrb[0].mxu0 %v783
    %v869 = vpop.f32.mrb[0].mxu0
    %v870 = vadd.f32 %v692, %v869
    %v871 = vpop.f32.mrb[0].mxu0
    %v872 = vpop.f32.mrb[0].mxu0
    %v873 = vadd.f32 %v692, %v872
    %v874 = vpop.f32.mrb[0].mxu0
    %875 = vmatprep.mubr.bf16.mxu0 0
    %876 = vmatmul.mubr.bf16.gmra.mrb[0].mxu0 %v786
    %v877 = vpop.f32.mrb[0].mxu0
    %v878 = vadd.f32 %v692, %v877
    %v879 = vpop.f32.mrb[0].mxu0
    %v880 = vpop.f32.mrb[0].mxu0
    %v881 = vadd.f32 %v692, %v880
    %v882 = vpop.f32.mrb[0].mxu0
    %883 = vmatprep.mubr.bf16.mxu0 0
    %884 = vmatmul.mubr.bf16.gmra.mrb[0].mxu0 %v789
    %v885 = vpop.f32.mrb[0].mxu0
    %v886 = vadd.f32 %v692, %v885
    %v887 = vpop.f32.mrb[0].mxu0
    %v888 = vpop.f32.mrb[0].mxu0
    %v889 = vadd.f32 %v692, %v888
    %v890 = vpop.f32.mrb[0].mxu0
    %891 = vmatprep.mubr.bf16.mxu0 0
    %892 = vmatmul.mubr.bf16.gmra.mrb[0].mxu0 %v792
    %v893 = vpop.f32.mrb[0].mxu0
    %v894 = vadd.f32 %v692, %v893
    %v895 = vpop.f32.mrb[0].mxu0
    %v896 = vpop.f32.mrb[0].mxu0
    %v897 = vadd.f32 %v692, %v896
    %v898 = vpop.f32.mrb[0].mxu0
    %899 = vmatprep.mubr.bf16.mxu0 0
    %900 = vmatmul.mubr.bf16.gmra.mrb[0].mxu0 %v795
    %v901 = vpop.f32.mrb[0].mxu0
    %v902 = vadd.f32 %v692, %v901
    %v903 = vpop.f32.mrb[0].mxu0
    %v904 = vpop.f32.mrb[0].mxu0
    %v905 = vadd.f32 %v692, %v904
    %v906 = vpop.f32.mrb[0].mxu0
    %907 = vmatprep.mubr.bf16.mxu0 0
    %908 = vmatmul.mubr.bf16.gmra.mrb[0].mxu0 %v798
    %v909 = vpop.f32.mrb[0].mxu0
    %v910 = vadd.f32 %v692, %v909
    %v911 = vpop.f32.mrb[0].mxu0
    %v912 = vpop.f32.mrb[0].mxu0
    %v913 = vadd.f32 %v692, %v912
    %v914 = vpop.f32.mrb[0].mxu0
    %915 = vmatprep.mubr.bf16.mxu0 0
    %916 = vmatmul.mubr.bf16.gmra.mrb[0].mxu0 %v801
    %v917 = vpop.f32.mrb[0].mxu0
    %v918 = vadd.f32 %v692, %v917
    %v919 = vpop.f32.mrb[0].mxu0
    %v920 = vpop.f32.mrb[0].mxu0
    %v921 = vadd.f32 %v692, %v920
    %v922 = vpop.f32.mrb[0].mxu0
    %923 = vmatprep.mubr.bf16.mxu0 0
    %924 = vmatmul.mubr.bf16.gmra.mrb[0].mxu0 %v804
    %v925 = vpop.f32.mrb[0].mxu0
    %v926 = vadd.f32 %v692, %v925
    %v927 = vpop.f32.mrb[0].mxu0
    %v928 = vpop.f32.mrb[0].mxu0
    %v929 = vadd.f32 %v692, %v928
    %v930 = vpop.f32.mrb[0].mxu0
    %931 = vmatprep.mubr.bf16.mxu0 0
    %932 = vmatmul.mubr.bf16.gmra.mrb[0].mxu0 %v807
    %v933 = vpop.f32.mrb[0].mxu0
    %v934 = vadd.f32 %v692, %v933
    %v935 = vpop.f32.mrb[0].mxu0
    %v936 = vpop.f32.mrb[0].mxu0
    %v937 = vadd.f32 %v692, %v936
    %v938 = vpop.f32.mrb[0].mxu0
    %939 = vmatprep.mubr.bf16.mxu0 0
    %940 = vmatmul.mubr.bf16.gmra.mrb[0].mxu0 %v810
    %v941 = vpop.f32.mrb[0].mxu0
    %v942 = vadd.f32 %v692, %v941
    %v943 = vpop.f32.mrb[0].mxu0
    %v944 = vpop.f32.mrb[0].mxu0
    %v945 = vadd.f32 %v692, %v944
    %v946 = vpop.f32.mrb[0].mxu0
    %947 = vmatprep.mubr.bf16.mxu0 0
    %948 = vmatmul.mubr.bf16.gmra.mrb[0].mxu0 %v813
    %v949 = vpop.f32.mrb[0].mxu0
    %v950 = vadd.f32 %v692, %v949
    %v951 = vpop.f32.mrb[0].mxu0
    %v952 = vpop.f32.mrb[0].mxu0
    %v953 = vadd.f32 %v692, %v952
    %v954 = vpop.f32.mrb[0].mxu0
    %955 = vmatprep.mubr.bf16.mxu0 0
    %956 = vmatmul.mubr.bf16.gmra.mrb[0].mxu0 %v816
    %v957 = vpop.f32.mrb[0].mxu0
    %v958 = vadd.f32 %v692, %v957
    %v959 = vpop.f32.mrb[0].mxu0
    %v960 = vpop.f32.mrb[0].mxu0
    %v961 = vadd.f32 %v692, %v960
    %v962 = vpop.f32.mrb[0].mxu0
    %963 = vmatprep.mubr.bf16.mxu0 0
    %964 = vmatmul.mubr.bf16.gmra.mrb[0].mxu0 %v819
    %v965 = vpop.f32.mrb[0].mxu0
    %v966 = vadd.f32 %v692, %v965
    %v967 = vpop.f32.mrb[0].mxu0
    %v968 = vpop.f32.mrb[0].mxu0
    %v969 = vadd.f32 %v692, %v968
    %v970 = vpop.f32.mrb[0].mxu0
    %971 = vmatprep.mubr.bf16.mxu0 0
    %972 = vmatmul.mubr.bf16.gmra.mrb[0].mxu0 %v822
    %v973 = vpop.f32.mrb[0].mxu0
    %v974 = vadd.f32 %v692, %v973
    %v975 = vpop.f32.mrb[0].mxu0
    %v976 = vpop.f32.mrb[0].mxu0
    %v977 = vadd.f32 %v692, %v976
    %v978 = vpop.f32.mrb[0].mxu0
    %979 = vmatprep.mubr.bf16.mxu0 0
    %980 = vmatmul.mubr.bf16.gmra.mrb[0].mxu0 %v825
    %v981 = vpop.f32.mrb[0].mxu0
    %v982 = vadd.f32 %v692, %v981
    %v983 = vpop.f32.mrb[0].mxu0
    %v984 = vpop.f32.mrb[0].mxu0
    %v985 = vadd.f32 %v692, %v984
    %v986 = vpop.f32.mrb[0].mxu0
    %987 = vdwg.mxu0
    %v988 = vmax.f32 %v862, 0.0
    %v989 = vmax.f32 %v865, 0.0
    %v990 = vmax.f32 %v870, 0.0
    %v991 = vmax.f32 %v873, 0.0
    %v992 = vmax.f32 %v878, 0.0
    %v993 = vmax.f32 %v881, 0.0
    %v994 = vmax.f32 %v886, 0.0
    %v995 = vmax.f32 %v889, 0.0
    %v996 = vmax.f32 %v894, 0.0
    %v997 = vmax.f32 %v897, 0.0
    %v998 = vmax.f32 %v902, 0.0
    %v999 = vmax.f32 %v905, 0.0
    %v1000 = vmax.f32 %v910, 0.0
    %v1001 = vmax.f32 %v913, 0.0
    %v1002 = vmax.f32 %v918, 0.0
    %v1003 = vmax.f32 %v921, 0.0
    %v1004 = vmax.f32 %v926, 0.0
    %v1005 = vmax.f32 %v929, 0.0
    %v1006 = vmax.f32 %v934, 0.0
    %v1007 = vmax.f32 %v937, 0.0
    %v1008 = vmax.f32 %v942, 0.0
    %v1009 = vmax.f32 %v945, 0.0
    %v1010 = vmax.f32 %v950, 0.0
    %v1011 = vmax.f32 %v953, 0.0
    %v1012 = vmax.f32 %v958, 0.0
    %v1013 = vmax.f32 %v961, 0.0
    %v1014 = vmax.f32 %v966, 0.0
    %v1015 = vmax.f32 %v969, 0.0
    %v1016 = vmax.f32 %v974, 0.0
    %v1017 = vmax.f32 %v977, 0.0
    %v1018 = vmax.f32 %v982, 0.0
    %v1019 = vmax.f32 %v985, 0.0
    %v1020 = vpack.c.bf16 %v989, %v988
    %v1021 = vpack.c.bf16 %v991, %v990
    %v1022 = vpack.c.bf16 %v993, %v992
    %v1023 = vpack.c.bf16 %v995, %v994
    %v1024 = vpack.c.bf16 %v997, %v996
    %v1025 = vpack.c.bf16 %v999, %v998
    %v1026 = vpack.c.bf16 %v1001, %v1000
    %v1027 = vpack.c.bf16 %v1003, %v1002
    %v1028 = vpack.c.bf16 %v1005, %v1004
    %v1029 = vpack.c.bf16 %v1007, %v1006
    %v1030 = vpack.c.bf16 %v1009, %v1008
    %v1031 = vpack.c.bf16 %v1011, %v1010
    %v1032 = vpack.c.bf16 %v1013, %v1012
    %v1033 = vpack.c.bf16 %v1015, %v1014
    %v1034 = vpack.c.bf16 %v1017, %v1016
    %v1035 = vpack.c.bf16 %v1019, %v1018
    %v1036 = vld [vmem:[%s2 + $0x20] sm:$0xf]
    %v1037 = vld [vmem:[%s2 + $0x24] sm:$0xf]
    %v1038 = vld [vmem:[%s2 + $0x28] sm:$0xf]
    %v1039 = vld [vmem:[%s2 + $0x2c] sm:$0xf]
    %v1040 = vld [vmem:[%s3 + $0x4] sm:$0x1]
    %v1041 = vlaneseq
    %v1042 = vshrl.u32 %v1041, 7
    %v1043 = vsub.s32 0, %v1042
    %v1044 = vrot.slane %v1040, %v1043
    %v1049 = vunpack.c.l.b16 %v1036
    %v1050 = vunpack.c.l.b16 %v1037
    %v1051 = vunpack.c.l.b16 %v1038
    %v1052 = vunpack.c.l.b16 %v1039
    %v1053 = vpack.c.b16 %v1050, %v1049
    %v1054 = vpack.c.b16 %v1052, %v1051
    %vm1057 = vcmask 261120
    %v1059 = vsel %vm1057, %v1020, 0
    %v1062 = vsel %vm1057, %v1021, 0
    %v1065 = vsel %vm1057, %v1022, 0
    %v1068 = vsel %vm1057, %v1023, 0
    %v1071 = vsel %vm1057, %v1024, 0
    %v1074 = vsel %vm1057, %v1025, 0
    %v1077 = vsel %vm1057, %v1026, 0
    %v1080 = vsel %vm1057, %v1027, 0
    %v1083 = vsel %vm1057, %v1028, 0
    %v1086 = vsel %vm1057, %v1029, 0
    %v1089 = vsel %vm1057, %v1030, 0
    %v1092 = vsel %vm1057, %v1031, 0
    %v1095 = vsel %vm1057, %v1032, 0
    %v1098 = vsel %vm1057, %v1033, 0
    %v1101 = vsel %vm1057, %v1034, 0
    %v1104 = vsel %vm1057, %v1035, 0
    %1106 = vmatprep.subr.bf16.mxu0 0
    %1107 = vmatpush1.bf16.msra.mxu0 %v1053
    %1108 = vmatprep.subr.bf16.mxu0 0
    %1109 = vmatpush1.bf16.msra.mxu0 %v1054
    %1110 = vmatprep.subr.bf16.mxu0 0
    %1111 = vmatpush1.bf16.msra.mxu0 0
    %1112 = vmatprep.subr.bf16.mxu0 0
    %1113 = vmatpush1.bf16.msra.mxu0 0
    %1114 = vmatprep.subr.bf16.mxu0 0
    %1115 = vmatpush1.bf16.msra.mxu0 0
    %1116 = vmatprep.subr.bf16.mxu0 0
    %1117 = vmatpush1.bf16.msra.mxu0 0
    %1118 = vmatprep.subr.bf16.mxu0 0
    %1119 = vmatpush1.bf16.msra.mxu0 0
    %1120 = vmatprep.subr.bf16.mxu0 0
    %1121 = vmatpush1.bf16.msra.mxu0 0
    %1122 = vmatprep.subr.bf16.mxu0 0
    %1123 = vmatpush1.bf16.msra.mxu0 0
    %1124 = vmatprep.subr.bf16.mxu0 0
    %1125 = vmatpush1.bf16.msra.mxu0 0
    %1126 = vmatprep.subr.bf16.mxu0 0
    %1127 = vmatpush1.bf16.msra.mxu0 0
    %1128 = vmatprep.subr.bf16.mxu0 0
    %1129 = vmatpush1.bf16.msra.mxu0 0
    %1130 = vmatprep.subr.bf16.mxu0 0
    %1131 = vmatpush1.bf16.msra.mxu0 0
    %1132 = vmatprep.subr.bf16.mxu0 0
    %1133 = vmatpush1.bf16.msra.mxu0 0
    %1134 = vmatprep.subr.bf16.mxu0 0
    %1135 = vmatpush1.bf16.msra.mxu0 0
    %1136 = vmatprep.subr.bf16.mxu0 0
    %1137 = vmatpush1.bf16.msra.mxu0 0
    %1138 = vmatprep.mubr.bf16.mxu0 0
    %1139 = vmatmul.mubr.bf16.gmra.mrb[0].mxu0 %v1059
    %v1140 = vpop.f32.mrb[0].mxu0
    %v1141 = vadd.f32 %v1044, %v1140
    %v1142 = vpop.f32.mrb[0].mxu0
    %v1143 = vpop.f32.mrb[0].mxu0
    %v1144 = vadd.f32 %v1044, %v1143
    %v1145 = vpop.f32.mrb[0].mxu0
    %1146 = vmatprep.mubr.bf16.mxu0 0
    %1147 = vmatmul.mubr.bf16.gmra.mrb[0].mxu0 %v1062
    %v1148 = vpop.f32.mrb[0].mxu0
    %v1149 = vadd.f32 %v1044, %v1148
    %v1150 = vpop.f32.mrb[0].mxu0
    %v1151 = vpop.f32.mrb[0].mxu0
    %v1152 = vadd.f32 %v1044, %v1151
    %v1153 = vpop.f32.mrb[0].mxu0
    %1154 = vmatprep.mubr.bf16.mxu0 0
    %1155 = vmatmul.mubr.bf16.gmra.mrb[0].mxu0 %v1065
    %v1156 = vpop.f32.mrb[0].mxu0
    %v1157 = vadd.f32 %v1044, %v1156
    %v1158 = vpop.f32.mrb[0].mxu0
    %v1159 = vpop.f32.mrb[0].mxu0
    %v1160 = vadd.f32 %v1044, %v1159
    %v1161 = vpop.f32.mrb[0].mxu0
    %1162 = vmatprep.mubr.bf16.mxu0 0
    %1163 = vmatmul.mubr.bf16.gmra.mrb[0].mxu0 %v1068
    %v1164 = vpop.f32.mrb[0].mxu0
    %v1165 = vadd.f32 %v1044, %v1164
    %v1166 = vpop.f32.mrb[0].mxu0
    %v1167 = vpop.f32.mrb[0].mxu0
    %v1168 = vadd.f32 %v1044, %v1167
    %v1169 = vpop.f32.mrb[0].mxu0
    %1170 = vmatprep.mubr.bf16.mxu0 0
    %1171 = vmatmul.mubr.bf16.gmra.mrb[0].mxu0 %v1071
    %v1172 = vpop.f32.mrb[0].mxu0
    %v1173 = vadd.f32 %v1044, %v1172
    %v1174 = vpop.f32.mrb[0].mxu0
    %v1175 = vpop.f32.mrb[0].mxu0
    %v1176 = vadd.f32 %v1044, %v1175
    %v1177 = vpop.f32.mrb[0].mxu0
    %1178 = vmatprep.mubr.bf16.mxu0 0
    %1179 = vmatmul.mubr.bf16.gmra.mrb[0].mxu0 %v1074
    %v1180 = vpop.f32.mrb[0].mxu0
    %v1181 = vadd.f32 %v1044, %v1180
    %v1182 = vpop.f32.mrb[0].mxu0
    %v1183 = vpop.f32.mrb[0].mxu0
    %v1184 = vadd.f32 %v1044, %v1183
    %v1185 = vpop.f32.mrb[0].mxu0
    %1186 = vmatprep.mubr.bf16.mxu0 0
    %1187 = vmatmul.mubr.bf16.gmra.mrb[0].mxu0 %v1077
    %v1188 = vpop.f32.mrb[0].mxu0
    %v1189 = vadd.f32 %v1044, %v1188
    %v1190 = vpop.f32.mrb[0].mxu0
    %v1191 = vpop.f32.mrb[0].mxu0
    %v1192 = vadd.f32 %v1044, %v1191
    %v1193 = vpop.f32.mrb[0].mxu0
    %1194 = vmatprep.mubr.bf16.mxu0 0
    %1195 = vmatmul.mubr.bf16.gmra.mrb[0].mxu0 %v1080
    %v1196 = vpop.f32.mrb[0].mxu0
    %v1197 = vadd.f32 %v1044, %v1196
    %v1198 = vpop.f32.mrb[0].mxu0
    %v1199 = vpop.f32.mrb[0].mxu0
    %v1200 = vadd.f32 %v1044, %v1199
    %v1201 = vpop.f32.mrb[0].mxu0
    %1202 = vmatprep.mubr.bf16.mxu0 0
    %1203 = vmatmul.mubr.bf16.gmra.mrb[0].mxu0 %v1083
    %v1204 = vpop.f32.mrb[0].mxu0
    %v1205 = vadd.f32 %v1044, %v1204
    %v1206 = vpop.f32.mrb[0].mxu0
    %v1207 = vpop.f32.mrb[0].mxu0
    %v1208 = vadd.f32 %v1044, %v1207
    %v1209 = vpop.f32.mrb[0].mxu0
    %1210 = vmatprep.mubr.bf16.mxu0 0
    %1211 = vmatmul.mubr.bf16.gmra.mrb[0].mxu0 %v1086
    %v1212 = vpop.f32.mrb[0].mxu0
    %v1213 = vadd.f32 %v1044, %v1212
    %v1214 = vpop.f32.mrb[0].mxu0
    %v1215 = vpop.f32.mrb[0].mxu0
    %v1216 = vadd.f32 %v1044, %v1215
    %v1217 = vpop.f32.mrb[0].mxu0
    %1218 = vmatprep.mubr.bf16.mxu0 0
    %1219 = vmatmul.mubr.bf16.gmra.mrb[0].mxu0 %v1089
    %v1220 = vpop.f32.mrb[0].mxu0
    %v1221 = vadd.f32 %v1044, %v1220
    %v1222 = vpop.f32.mrb[0].mxu0
    %v1223 = vpop.f32.mrb[0].mxu0
    %v1224 = vadd.f32 %v1044, %v1223
    %v1225 = vpop.f32.mrb[0].mxu0
    %1226 = vmatprep.mubr.bf16.mxu0 0
    %1227 = vmatmul.mubr.bf16.gmra.mrb[0].mxu0 %v1092
    %v1228 = vpop.f32.mrb[0].mxu0
    %v1229 = vadd.f32 %v1044, %v1228
    %v1230 = vpop.f32.mrb[0].mxu0
    %v1231 = vpop.f32.mrb[0].mxu0
    %v1232 = vadd.f32 %v1044, %v1231
    %v1233 = vpop.f32.mrb[0].mxu0
    %1234 = vmatprep.mubr.bf16.mxu0 0
    %1235 = vmatmul.mubr.bf16.gmra.mrb[0].mxu0 %v1095
    %v1236 = vpop.f32.mrb[0].mxu0
    %v1237 = vadd.f32 %v1044, %v1236
    %v1238 = vpop.f32.mrb[0].mxu0
    %v1239 = vpop.f32.mrb[0].mxu0
    %v1240 = vadd.f32 %v1044, %v1239
    %v1241 = vpop.f32.mrb[0].mxu0
    %1242 = vmatprep.mubr.bf16.mxu0 0
    %1243 = vmatmul.mubr.bf16.gmra.mrb[0].mxu0 %v1098
    %v1244 = vpop.f32.mrb[0].mxu0
    %v1245 = vadd.f32 %v1044, %v1244
    %v1246 = vpop.f32.mrb[0].mxu0
    %v1247 = vpop.f32.mrb[0].mxu0
    %v1248 = vadd.f32 %v1044, %v1247
    %v1249 = vpop.f32.mrb[0].mxu0
    %1250 = vmatprep.mubr.bf16.mxu0 0
    %1251 = vmatmul.mubr.bf16.gmra.mrb[0].mxu0 %v1101
    %v1252 = vpop.f32.mrb[0].mxu0
    %v1253 = vadd.f32 %v1044, %v1252
    %v1254 = vpop.f32.mrb[0].mxu0
    %v1255 = vpop.f32.mrb[0].mxu0
    %v1256 = vadd.f32 %v1044, %v1255
    %v1257 = vpop.f32.mrb[0].mxu0
    %1258 = vmatprep.mubr.bf16.mxu0 0
    %1259 = vmatmul.mubr.bf16.gmra.mrb[0].mxu0 %v1104
    %v1260 = vpop.f32.mrb[0].mxu0
    %v1261 = vadd.f32 %v1044, %v1260
    %v1262 = vpop.f32.mrb[0].mxu0
    %v1263 = vpop.f32.mrb[0].mxu0
    %v1264 = vadd.f32 %v1044, %v1263
    %v1265 = vpop.f32.mrb[0].mxu0
    %1266 = vdwg.mxu0
    %v1267 = vmax.f32 %v1141, 0.0
    %v1268 = vmax.f32 %v1144, 0.0
    %v1269 = vmax.f32 %v1149, 0.0
    %v1270 = vmax.f32 %v1152, 0.0
    %v1271 = vmax.f32 %v1157, 0.0
    %v1272 = vmax.f32 %v1160, 0.0
    %v1273 = vmax.f32 %v1165, 0.0
    %v1274 = vmax.f32 %v1168, 0.0
    %v1275 = vmax.f32 %v1173, 0.0
    %v1276 = vmax.f32 %v1176, 0.0
    %v1277 = vmax.f32 %v1181, 0.0
    %v1278 = vmax.f32 %v1184, 0.0
    %v1279 = vmax.f32 %v1189, 0.0
    %v1280 = vmax.f32 %v1192, 0.0
    %v1281 = vmax.f32 %v1197, 0.0
    %v1282 = vmax.f32 %v1200, 0.0
    %v1283 = vmax.f32 %v1205, 0.0
    %v1284 = vmax.f32 %v1208, 0.0
    %v1285 = vmax.f32 %v1213, 0.0
    %v1286 = vmax.f32 %v1216, 0.0
    %v1287 = vmax.f32 %v1221, 0.0
    %v1288 = vmax.f32 %v1224, 0.0
    %v1289 = vmax.f32 %v1229, 0.0
    %v1290 = vmax.f32 %v1232, 0.0
    %v1291 = vmax.f32 %v1237, 0.0
    %v1292 = vmax.f32 %v1240, 0.0
    %v1293 = vmax.f32 %v1245, 0.0
    %v1294 = vmax.f32 %v1248, 0.0
    %v1295 = vmax.f32 %v1253, 0.0
    %v1296 = vmax.f32 %v1256, 0.0
    %v1297 = vmax.f32 %v1261, 0.0
    %v1298 = vmax.f32 %v1264, 0.0
    %v1299 = vpack.c.bf16 %v1268, %v1267
    %v1300 = vpack.c.bf16 %v1270, %v1269
    %v1301 = vpack.c.bf16 %v1272, %v1271
    %v1302 = vpack.c.bf16 %v1274, %v1273
    %v1303 = vpack.c.bf16 %v1276, %v1275
    %v1304 = vpack.c.bf16 %v1278, %v1277
    %v1305 = vpack.c.bf16 %v1280, %v1279
    %v1306 = vpack.c.bf16 %v1282, %v1281
    %v1307 = vpack.c.bf16 %v1284, %v1283
    %v1308 = vpack.c.bf16 %v1286, %v1285
    %v1309 = vpack.c.bf16 %v1288, %v1287
    %v1310 = vpack.c.bf16 %v1290, %v1289
    %v1311 = vpack.c.bf16 %v1292, %v1291
    %v1312 = vpack.c.bf16 %v1294, %v1293
    %v1313 = vpack.c.bf16 %v1296, %v1295
    %v1314 = vpack.c.bf16 %v1298, %v1297
    %v1315 = vld [vmem:[%s2 + $0x30] sm:$0xf]
    %v1316 = vld [vmem:[%s2 + $0x34] sm:$0xf]
    %v1317 = vld [vmem:[%s2 + $0x38] sm:$0xf]
    %v1318 = vld [vmem:[%s2 + $0x3c] sm:$0xf]
    %v1319 = vld [vmem:[%s3 + $0x5] sm:$0x1]
    %v1320 = vlaneseq
    %v1321 = vshrl.u32 %v1320, 7
    %v1322 = vsub.s32 0, %v1321
    %v1323 = vrot.slane %v1319, %v1322
    %v1328 = vunpack.c.l.b16 %v1315
    %v1329 = vunpack.c.l.b16 %v1316
    %v1330 = vunpack.c.l.b16 %v1317
    %v1331 = vunpack.c.l.b16 %v1318
    %v1332 = vpack.c.b16 %v1329, %v1328
    %v1333 = vpack.c.b16 %v1331, %v1330
    %v1337 = vsel %vm1057, %v1299, 0
    %v1340 = vsel %vm1057, %v1300, 0
    %v1343 = vsel %vm1057, %v1301, 0
    %v1346 = vsel %vm1057, %v1302, 0
    %v1349 = vsel %vm1057, %v1303, 0
    %v1352 = vsel %vm1057, %v1304, 0
    %v1355 = vsel %vm1057, %v1305, 0
    %v1358 = vsel %vm1057, %v1306, 0
    %v1361 = vsel %vm1057, %v1307, 0
    %v1364 = vsel %vm1057, %v1308, 0
    %v1367 = vsel %vm1057, %v1309, 0
    %v1370 = vsel %vm1057, %v1310, 0
    %v1373 = vsel %vm1057, %v1311, 0
    %v1376 = vsel %vm1057, %v1312, 0
    %v1379 = vsel %vm1057, %v1313, 0
    %v1382 = vsel %vm1057, %v1314, 0
    %1384 = vmatprep.subr.bf16.mxu0 0
    %1385 = vmatpush1.bf16.msra.mxu0 %v1332
    %1386 = vmatprep.subr.bf16.mxu0 0
    %1387 = vmatpush1.bf16.msra.mxu0 %v1333
    %1388 = vmatprep.subr.bf16.mxu0 0
    %1389 = vmatpush1.bf16.msra.mxu0 0
    %1390 = vmatprep.subr.bf16.mxu0 0
    %1391 = vmatpush1.bf16.msra.mxu0 0
    %1392 = vmatprep.subr.bf16.mxu0 0
    %1393 = vmatpush1.bf16.msra.mxu0 0
    %1394 = vmatprep.subr.bf16.mxu0 0
    %1395 = vmatpush1.bf16.msra.mxu0 0
    %1396 = vmatprep.subr.bf16.mxu0 0
    %1397 = vmatpush1.bf16.msra.mxu0 0
    %1398 = vmatprep.subr.bf16.mxu0 0
    %1399 = vmatpush1.bf16.msra.mxu0 0
    %1400 = vmatprep.subr.bf16.mxu0 0
    %1401 = vmatpush1.bf16.msra.mxu0 0
    %1402 = vmatprep.subr.bf16.mxu0 0
    %1403 = vmatpush1.bf16.msra.mxu0 0
    %1404 = vmatprep.subr.bf16.mxu0 0
    %1405 = vmatpush1.bf16.msra.mxu0 0
    %1406 = vmatprep.subr.bf16.mxu0 0
    %1407 = vmatpush1.bf16.msra.mxu0 0
    %1408 = vmatprep.subr.bf16.mxu0 0
    %1409 = vmatpush1.bf16.msra.mxu0 0
    %1410 = vmatprep.subr.bf16.mxu0 0
    %1411 = vmatpush1.bf16.msra.mxu0 0
    %1412 = vmatprep.subr.bf16.mxu0 0
    %1413 = vmatpush1.bf16.msra.mxu0 0
    %1414 = vmatprep.subr.bf16.mxu0 0
    %1415 = vmatpush1.bf16.msra.mxu0 0
    %1416 = vmatprep.mubr.bf16.mxu0 0
    %1417 = vmatmul.mubr.bf16.gmra.mrb[0].mxu0 %v1337
    %v1418 = vpop.f32.mrb[0].mxu0
    %v1419 = vadd.f32 %v1323, %v1418
    %v1420 = vpop.f32.mrb[0].mxu0
    %v1421 = vpop.f32.mrb[0].mxu0
    %v1422 = vadd.f32 %v1323, %v1421
    %v1423 = vpop.f32.mrb[0].mxu0
    %1424 = vmatprep.mubr.bf16.mxu0 0
    %1425 = vmatmul.mubr.bf16.gmra.mrb[0].mxu0 %v1340
    %v1426 = vpop.f32.mrb[0].mxu0
    %v1427 = vadd.f32 %v1323, %v1426
    %v1428 = vpop.f32.mrb[0].mxu0
    %v1429 = vpop.f32.mrb[0].mxu0
    %v1430 = vadd.f32 %v1323, %v1429
    %v1431 = vpop.f32.mrb[0].mxu0
    %1432 = vmatprep.mubr.bf16.mxu0 0
    %1433 = vmatmul.mubr.bf16.gmra.mrb[0].mxu0 %v1343
    %v1434 = vpop.f32.mrb[0].mxu0
    %v1435 = vadd.f32 %v1323, %v1434
    %v1436 = vpop.f32.mrb[0].mxu0
    %v1437 = vpop.f32.mrb[0].mxu0
    %v1438 = vadd.f32 %v1323, %v1437
    %v1439 = vpop.f32.mrb[0].mxu0
    %1440 = vmatprep.mubr.bf16.mxu0 0
    %1441 = vmatmul.mubr.bf16.gmra.mrb[0].mxu0 %v1346
    %v1442 = vpop.f32.mrb[0].mxu0
    %v1443 = vadd.f32 %v1323, %v1442
    %v1444 = vpop.f32.mrb[0].mxu0
    %v1445 = vpop.f32.mrb[0].mxu0
    %v1446 = vadd.f32 %v1323, %v1445
    %v1447 = vpop.f32.mrb[0].mxu0
    %1448 = vmatprep.mubr.bf16.mxu0 0
    %1449 = vmatmul.mubr.bf16.gmra.mrb[0].mxu0 %v1349
    %v1450 = vpop.f32.mrb[0].mxu0
    %v1451 = vadd.f32 %v1323, %v1450
    %v1452 = vpop.f32.mrb[0].mxu0
    %v1453 = vpop.f32.mrb[0].mxu0
    %v1454 = vadd.f32 %v1323, %v1453
    %v1455 = vpop.f32.mrb[0].mxu0
    %1456 = vmatprep.mubr.bf16.mxu0 0
    %1457 = vmatmul.mubr.bf16.gmra.mrb[0].mxu0 %v1352
    %v1458 = vpop.f32.mrb[0].mxu0
    %v1459 = vadd.f32 %v1323, %v1458
    %v1460 = vpop.f32.mrb[0].mxu0
    %v1461 = vpop.f32.mrb[0].mxu0
    %v1462 = vadd.f32 %v1323, %v1461
    %v1463 = vpop.f32.mrb[0].mxu0
    %1464 = vmatprep.mubr.bf16.mxu0 0
    %1465 = vmatmul.mubr.bf16.gmra.mrb[0].mxu0 %v1355
    %v1466 = vpop.f32.mrb[0].mxu0
    %v1467 = vadd.f32 %v1323, %v1466
    %v1468 = vpop.f32.mrb[0].mxu0
    %v1469 = vpop.f32.mrb[0].mxu0
    %v1470 = vadd.f32 %v1323, %v1469
    %v1471 = vpop.f32.mrb[0].mxu0
    %1472 = vmatprep.mubr.bf16.mxu0 0
    %1473 = vmatmul.mubr.bf16.gmra.mrb[0].mxu0 %v1358
    %v1474 = vpop.f32.mrb[0].mxu0
    %v1475 = vadd.f32 %v1323, %v1474
    %v1476 = vpop.f32.mrb[0].mxu0
    %v1477 = vpop.f32.mrb[0].mxu0
    %v1478 = vadd.f32 %v1323, %v1477
    %v1479 = vpop.f32.mrb[0].mxu0
    %1480 = vmatprep.mubr.bf16.mxu0 0
    %1481 = vmatmul.mubr.bf16.gmra.mrb[0].mxu0 %v1361
    %v1482 = vpop.f32.mrb[0].mxu0
    %v1483 = vadd.f32 %v1323, %v1482
    %v1484 = vpop.f32.mrb[0].mxu0
    %v1485 = vpop.f32.mrb[0].mxu0
    %v1486 = vadd.f32 %v1323, %v1485
    %v1487 = vpop.f32.mrb[0].mxu0
    %1488 = vmatprep.mubr.bf16.mxu0 0
    %1489 = vmatmul.mubr.bf16.gmra.mrb[0].mxu0 %v1364
    %v1490 = vpop.f32.mrb[0].mxu0
    %v1491 = vadd.f32 %v1323, %v1490
    %v1492 = vpop.f32.mrb[0].mxu0
    %v1493 = vpop.f32.mrb[0].mxu0
    %v1494 = vadd.f32 %v1323, %v1493
    %v1495 = vpop.f32.mrb[0].mxu0
    %1496 = vmatprep.mubr.bf16.mxu0 0
    %1497 = vmatmul.mubr.bf16.gmra.mrb[0].mxu0 %v1367
    %v1498 = vpop.f32.mrb[0].mxu0
    %v1499 = vadd.f32 %v1323, %v1498
    %v1500 = vpop.f32.mrb[0].mxu0
    %v1501 = vpop.f32.mrb[0].mxu0
    %v1502 = vadd.f32 %v1323, %v1501
    %v1503 = vpop.f32.mrb[0].mxu0
    %1504 = vmatprep.mubr.bf16.mxu0 0
    %1505 = vmatmul.mubr.bf16.gmra.mrb[0].mxu0 %v1370
    %v1506 = vpop.f32.mrb[0].mxu0
    %v1507 = vadd.f32 %v1323, %v1506
    %v1508 = vpop.f32.mrb[0].mxu0
    %v1509 = vpop.f32.mrb[0].mxu0
    %v1510 = vadd.f32 %v1323, %v1509
    %v1511 = vpop.f32.mrb[0].mxu0
    %1512 = vmatprep.mubr.bf16.mxu0 0
    %1513 = vmatmul.mubr.bf16.gmra.mrb[0].mxu0 %v1373
    %v1514 = vpop.f32.mrb[0].mxu0
    %v1515 = vadd.f32 %v1323, %v1514
    %v1516 = vpop.f32.mrb[0].mxu0
    %v1517 = vpop.f32.mrb[0].mxu0
    %v1518 = vadd.f32 %v1323, %v1517
    %v1519 = vpop.f32.mrb[0].mxu0
    %1520 = vmatprep.mubr.bf16.mxu0 0
    %1521 = vmatmul.mubr.bf16.gmra.mrb[0].mxu0 %v1376
    %v1522 = vpop.f32.mrb[0].mxu0
    %v1523 = vadd.f32 %v1323, %v1522
    %v1524 = vpop.f32.mrb[0].mxu0
    %v1525 = vpop.f32.mrb[0].mxu0
    %v1526 = vadd.f32 %v1323, %v1525
    %v1527 = vpop.f32.mrb[0].mxu0
    %1528 = vmatprep.mubr.bf16.mxu0 0
    %1529 = vmatmul.mubr.bf16.gmra.mrb[0].mxu0 %v1379
    %v1530 = vpop.f32.mrb[0].mxu0
    %v1531 = vadd.f32 %v1323, %v1530
    %v1532 = vpop.f32.mrb[0].mxu0
    %v1533 = vpop.f32.mrb[0].mxu0
    %v1534 = vadd.f32 %v1323, %v1533
    %v1535 = vpop.f32.mrb[0].mxu0
    %1536 = vmatprep.mubr.bf16.mxu0 0
    %1537 = vmatmul.mubr.bf16.gmra.mrb[0].mxu0 %v1382
    %v1538 = vpop.f32.mrb[0].mxu0
    %v1539 = vadd.f32 %v1323, %v1538
    %v1540 = vpop.f32.mrb[0].mxu0
    %v1541 = vpop.f32.mrb[0].mxu0
    %v1542 = vadd.f32 %v1323, %v1541
    %v1543 = vpop.f32.mrb[0].mxu0
    %1544 = vdwg.mxu0
    %v1545 = vmax.f32 %v1419, 0.0
    %v1546 = vmax.f32 %v1422, 0.0
    %v1547 = vmax.f32 %v1427, 0.0
    %v1548 = vmax.f32 %v1430, 0.0
    %v1549 = vmax.f32 %v1435, 0.0
    %v1550 = vmax.f32 %v1438, 0.0
    %v1551 = vmax.f32 %v1443, 0.0
    %v1552 = vmax.f32 %v1446, 0.0
    %v1553 = vmax.f32 %v1451, 0.0
    %v1554 = vmax.f32 %v1454, 0.0
    %v1555 = vmax.f32 %v1459, 0.0
    %v1556 = vmax.f32 %v1462, 0.0
    %v1557 = vmax.f32 %v1467, 0.0
    %v1558 = vmax.f32 %v1470, 0.0
    %v1559 = vmax.f32 %v1475, 0.0
    %v1560 = vmax.f32 %v1478, 0.0
    %v1561 = vmax.f32 %v1483, 0.0
    %v1562 = vmax.f32 %v1486, 0.0
    %v1563 = vmax.f32 %v1491, 0.0
    %v1564 = vmax.f32 %v1494, 0.0
    %v1565 = vmax.f32 %v1499, 0.0
    %v1566 = vmax.f32 %v1502, 0.0
    %v1567 = vmax.f32 %v1507, 0.0
    %v1568 = vmax.f32 %v1510, 0.0
    %v1569 = vmax.f32 %v1515, 0.0
    %v1570 = vmax.f32 %v1518, 0.0
    %v1571 = vmax.f32 %v1523, 0.0
    %v1572 = vmax.f32 %v1526, 0.0
    %v1573 = vmax.f32 %v1531, 0.0
    %v1574 = vmax.f32 %v1534, 0.0
    %v1575 = vmax.f32 %v1539, 0.0
    %v1576 = vmax.f32 %v1542, 0.0
    %v1577 = vmax.f32 %v1545, %v1546
    %v1578 = vrot.slane %v1577, 4
    %v1579 = vmax.f32 %v1577, %v1578
    %v1580 = vrot.slane %v1579, 2
    %v1581 = vmax.f32 %v1579, %v1580
    %v1582 = vrot.slane %v1581, 1
    %v1583 = vmax.f32 %v1581, %v1582
    %v1584 = vmax.f32 %v1547, %v1548
    %v1585 = vrot.slane %v1584, 4
    %v1586 = vmax.f32 %v1584, %v1585
    %v1587 = vrot.slane %v1586, 2
    %v1588 = vmax.f32 %v1586, %v1587
    %v1589 = vrot.slane %v1588, 1
    %v1590 = vmax.f32 %v1588, %v1589
    %v1591 = vmax.f32 %v1549, %v1550
    %v1592 = vrot.slane %v1591, 4
    %v1593 = vmax.f32 %v1591, %v1592
    %v1594 = vrot.slane %v1593, 2
    %v1595 = vmax.f32 %v1593, %v1594
    %v1596 = vrot.slane %v1595, 1
    %v1597 = vmax.f32 %v1595, %v1596
    %v1598 = vmax.f32 %v1551, %v1552
    %v1599 = vrot.slane %v1598, 4
    %v1600 = vmax.f32 %v1598, %v1599
    %v1601 = vrot.slane %v1600, 2
    %v1602 = vmax.f32 %v1600, %v1601
    %v1603 = vrot.slane %v1602, 1
    %v1604 = vmax.f32 %v1602, %v1603
    %v1605 = vmax.f32 %v1553, %v1554
    %v1606 = vrot.slane %v1605, 4
    %v1607 = vmax.f32 %v1605, %v1606
    %v1608 = vrot.slane %v1607, 2
    %v1609 = vmax.f32 %v1607, %v1608
    %v1610 = vrot.slane %v1609, 1
    %v1611 = vmax.f32 %v1609, %v1610
    %v1612 = vmax.f32 %v1555, %v1556
    %v1613 = vrot.slane %v1612, 4
    %v1614 = vmax.f32 %v1612, %v1613
    %v1615 = vrot.slane %v1614, 2
    %v1616 = vmax.f32 %v1614, %v1615
    %v1617 = vrot.slane %v1616, 1
    %v1618 = vmax.f32 %v1616, %v1617
    %v1619 = vmax.f32 %v1557, %v1558
    %v1620 = vrot.slane %v1619, 4
    %v1621 = vmax.f32 %v1619, %v1620
    %v1622 = vrot.slane %v1621, 2
    %v1623 = vmax.f32 %v1621, %v1622
    %v1624 = vrot.slane %v1623, 1
    %v1625 = vmax.f32 %v1623, %v1624
    %v1626 = vmax.f32 %v1559, %v1560
    %v1627 = vrot.slane %v1626, 4
    %v1628 = vmax.f32 %v1626, %v1627
    %v1629 = vrot.slane %v1628, 2
    %v1630 = vmax.f32 %v1628, %v1629
    %v1631 = vrot.slane %v1630, 1
    %v1632 = vmax.f32 %v1630, %v1631
    %v1633 = vmax.f32 %v1561, %v1562
    %v1634 = vrot.slane %v1633, 4
    %v1635 = vmax.f32 %v1633, %v1634
    %v1636 = vrot.slane %v1635, 2
    %v1637 = vmax.f32 %v1635, %v1636
    %v1638 = vrot.slane %v1637, 1
    %v1639 = vmax.f32 %v1637, %v1638
    %v1640 = vmax.f32 %v1563, %v1564
    %v1641 = vrot.slane %v1640, 4
    %v1642 = vmax.f32 %v1640, %v1641
    %v1643 = vrot.slane %v1642, 2
    %v1644 = vmax.f32 %v1642, %v1643
    %v1645 = vrot.slane %v1644, 1
    %v1646 = vmax.f32 %v1644, %v1645
    %v1647 = vmax.f32 %v1565, %v1566
    %v1648 = vrot.slane %v1647, 4
    %v1649 = vmax.f32 %v1647, %v1648
    %v1650 = vrot.slane %v1649, 2
    %v1651 = vmax.f32 %v1649, %v1650
    %v1652 = vrot.slane %v1651, 1
    %v1653 = vmax.f32 %v1651, %v1652
    %v1654 = vmax.f32 %v1567, %v1568
    %v1655 = vrot.slane %v1654, 4
    %v1656 = vmax.f32 %v1654, %v1655
    %v1657 = vrot.slane %v1656, 2
    %v1658 = vmax.f32 %v1656, %v1657
    %v1659 = vrot.slane %v1658, 1
    %v1660 = vmax.f32 %v1658, %v1659
    %v1661 = vmax.f32 %v1569, %v1570
    %v1662 = vrot.slane %v1661, 4
    %v1663 = vmax.f32 %v1661, %v1662
    %v1664 = vrot.slane %v1663, 2
    %v1665 = vmax.f32 %v1663, %v1664
    %v1666 = vrot.slane %v1665, 1
    %v1667 = vmax.f32 %v1665, %v1666
    %v1668 = vmax.f32 %v1571, %v1572
    %v1669 = vrot.slane %v1668, 4
    %v1670 = vmax.f32 %v1668, %v1669
    %v1671 = vrot.slane %v1670, 2
    %v1672 = vmax.f32 %v1670, %v1671
    %v1673 = vrot.slane %v1672, 1
    %v1674 = vmax.f32 %v1672, %v1673
    %v1675 = vmax.f32 %v1573, %v1574
    %v1676 = vrot.slane %v1675, 4
    %v1677 = vmax.f32 %v1675, %v1676
    %v1678 = vrot.slane %v1677, 2
    %v1679 = vmax.f32 %v1677, %v1678
    %v1680 = vrot.slane %v1679, 1
    %v1681 = vmax.f32 %v1679, %v1680
    %v1682 = vmax.f32 %v1575, %v1576
    %v1683 = vrot.slane %v1682, 4
    %v1684 = vmax.f32 %v1682, %v1683
    %v1685 = vrot.slane %v1684, 2
    %v1686 = vmax.f32 %v1684, %v1685
    %v1687 = vrot.slane %v1686, 1
    %v1688 = vmax.f32 %v1686, %v1687
    %v1689 = vadd.f32 %v638, %v1583
    %v1690 = vadd.f32 %v639, %v1590
    %v1691 = vadd.f32 %v640, %v1597
    %v1692 = vadd.f32 %v641, %v1604
    %v1693 = vadd.f32 %v642, %v1611
    %v1694 = vadd.f32 %v643, %v1618
    %v1695 = vadd.f32 %v644, %v1625
    %v1696 = vadd.f32 %v645, %v1632
    %v1697 = vadd.f32 %v646, %v1639
    %v1698 = vadd.f32 %v647, %v1646
    %v1699 = vadd.f32 %v648, %v1653
    %v1700 = vadd.f32 %v649, %v1660
    %v1701 = vadd.f32 %v650, %v1667
    %v1702 = vadd.f32 %v651, %v1674
    %v1703 = vadd.f32 %v652, %v1681
    %v1704 = vadd.f32 %v653, %v1688
    %vm1721 = vcmask 1041409
    %v1722 = vsel %vm1721, %v1690, %v1689
    %vm1723 = vcmask 1042434
    %v1724 = vsel %vm1723, %v1691, %v1722
    %vm1725 = vcmask 1043459
    %v1726 = vsel %vm1725, %v1692, %v1724
    %vm1727 = vcmask 1044484
    %v1728 = vsel %vm1727, %v1693, %v1726
    %vm1729 = vcmask 1045509
    %v1730 = vsel %vm1729, %v1694, %v1728
    %vm1731 = vcmask 1046534
    %v1732 = vsel %vm1731, %v1695, %v1730
    %vm1733 = vcmask 1047559
    %v1734 = vsel %vm1733, %v1696, %v1732
    %v1735 = vsel %vm1721, %v1698, %v1697
    %v1736 = vsel %vm1723, %v1699, %v1735
    %v1737 = vsel %vm1725, %v1700, %v1736
    %v1738 = vsel %vm1727, %v1701, %v1737
    %v1739 = vsel %vm1729, %v1702, %v1738
    %v1740 = vsel %vm1731, %v1703, %v1739
    %v1741 = vsel %vm1733, %v1704, %v1740
    %1744 = vst [vmem:[#allocation2] sm:$0xff] %v1734
    %1745 = vst [vmem:[#allocation2 + $0x8] sm:$0xff] %v1741
    // Predicated region
    $region18: #{tpu_custom_call.1} parent=1 // pred_check
      _
    $region19: #{tpu_custom_call.1} parent=1 // pred_check_branch
      %1747 = sbr.rel (0) target = $region21
    $region20: #{tpu_custom_call.1} parent=1 // pred_region
      %s1749 = ssub.s32 256, 256
      %1750 = vsyncadd [#allocation3], %s1749
      %s1751 = sshll.u32 [#allocation2], 4
      %s1752 = int_to_ptr.vmem [resolvable:$true] %s1751
      %1757 = dma.vmem_to_hbm [thread:$0]  %s1752, 256, %s4, [#allocation3], 128, 128, 8
    $region21: #{tpu_custom_call.1} parent=1 // pred_fallthru
      _
    // Predicated region
    $region22: #{tpu_custom_call.1} parent=1 // pred_check
      _
    $region23: #{tpu_custom_call.1} parent=1 // pred_check_branch
      %1759 = sbr.rel (0) target = $region25
    $region24: #{tpu_custom_call.1} parent=1 // pred_region
      %1760 = dma.done [#allocation3], 256
    $region25: #{tpu_custom_call.1} parent=1 // pred_fallthru
      _
    %1761 = vsyncpa [#allocation3], 1

</llo_original>
